<compile_context>
chip_gen: v7x
topology: tpu7x:2x2x1
jax: 0.10.0
libtpu: 0.0.40
codegen_flags: <defaults>
</compile_context>

<pallas_src>
import jax
import jax.numpy as jnp
from jax import lax
from jax.experimental import pallas as pl
from jax.experimental.pallas import tpu as pltpu

_MM_DTYPE = jnp.bfloat16  # MXU input dtype; accumulation stays f32.


def _layernorm(x, gamma, beta, eps=1e-5):
    # torch.nn.LayerNorm over the last dim (biased variance, eps inside sqrt).
    mean = jnp.mean(x, axis=-1, keepdims=True)
    var = jnp.mean((x - mean) ** 2, axis=-1, keepdims=True)
    return (x - mean) * lax.rsqrt(var + eps) * gamma + beta


def _mm(a, w):
    # `w` is already bf16 (cast once in prepare_params); cast `a`, accumulate f32.
    return jnp.dot(a.astype(_MM_DTYPE), w, preferred_element_type=jnp.float32)


def _make_predictor_kernel(TU, B, E, H, O):
    four_h = 4 * H
    unroll = True if TU <= 8 else 4   # chunk bounds code size; no full-U unroll

    def kernel(emb_ref,                        # (TU, B, E)  chunk of embedded tokens (f32)
               ln_in_g_ref, ln_in_b_ref,       # (1, E)
               wih0_ref,                       # (E, 4H)  bf16
               w_step_ref,                     # (2H, 8H) bf16: [[Whh0, Wih1], [0, Whh1]]
               b0_ref, b1_ref,                 # (1, 4H)  f32 (b_ih + b_hh combined)
               lin_w_ref, lin_b_ref,           # (H, O) bf16; (1, O) f32
               ln_out_g_ref, ln_out_b_ref,     # (1, O)
               y_ref,                          # (TU, B, O) output chunk (time-major)
               h_out_ref, c_out_ref,           # (2, B, H)  final states per layer
               g0_ref,                         # scratch (TU, B, 4H) f32: layer-0 input proj
               h1_ref,                         # scratch (TU, B, H)  f32: layer-1 outputs
               state_ref):                     # scratch (4, B, H)   f32: [h0, c0, h1, c1]
        c_idx = pl.program_id(0)

        # ---- chunk 0: zero-initialise the carried LSTM state ----------------
        @pl.when(c_idx == 0)
        def _():
            state_ref[...] = jnp.zeros_like(state_ref)

        # ---- batched front end for this chunk (hoisted off the recurrence) --
        # embedding_dropout: identity in eval mode.
        x = _layernorm(emb_ref[...], ln_in_g_ref[...], ln_in_b_ref[...])
        g0 = _mm(x.reshape(TU * B, E), wih0_ref[...]) + b0_ref[...]
        # NOTE(v7x): for very large chunks this scratch could be stored bf16;
        # with TU-chunking it is tiny, so keep f32 for accuracy.
        g0_ref[...] = g0.reshape(TU, B, four_h)

        w_step = w_step_ref[...]
        b1 = b1_ref[...]

        # One full-vreg sigmoid for all four gates (PyTorch order i, f, g, o):
        # scale the g lanes by 2 and use tanh(x) = 2*sigmoid(2x) - 1.
        lane = lax.broadcasted_iota(jnp.int32, (1, four_h), 1)
        g_lanes = (lane >= 2 * H) & (lane < 3 * H)
        gate_scale = jnp.where(g_lanes, jnp.float32(2.0), jnp.float32(1.0))

        def lstm_cell(gates, c_prev):
            # NOTE: at production H (multiple of 128) these gate slices are
            # lane-tile aligned; at toy H=32 they lower to masked VPU ops.
            s = jax.nn.sigmoid(gates * gate_scale)           # single EUP pass
            i_g = s[:, 0:H]
            f_g = s[:, H:2 * H]
            g_g = 2.0 * s[:, 2 * H:3 * H] - 1.0              # == tanh(gates_g)
            o_g = s[:, 3 * H:4 * H]
            c_new = f_g * c_prev + i_g * g_g
            h_new = o_g * jnp.tanh(c_new)
            return h_new, c_new

        def step_mm(h0, h1):
            # Single merged MXU pass per iteration:
            #   cols [0:4H)  = h0 @ Whh0              (layer-0 recurrent term)
            #   cols [4H:8H) = h0 @ Wih1 + h1 @ Whh1  (layer-1 full pre-activation)
            return _mm(jnp.concatenate([h0, h1], axis=1), w_step)   # (B, 8H)

        h0 = state_ref[0]
        c0 = state_ref[1]
        h1 = state_ref[2]
        c1 = state_ref[3]

        # ---- prologue: layer-0 local step 0 (uses carried h0; wih1 half of
        #      the merged matmul belongs to the previous chunk and is unused) --
        m = step_mm(h0, h1)
        h0, c0 = lstm_cell(g0_ref[0] + m[:, :four_h], c0)

        # ---- steady state: layer-0 step t and layer-1 step t-1 per iter -----
        # Both cells' gate math is packed along sublanes -> one sigmoid / VALU
        # pass per iteration.
        def body(t, carry):
            h0, c0, h1, c1 = carry
            m = step_mm(h0, h1)
            gates0 = g0_ref[t] + m[:, :four_h]          # layer 0, step t
            gates1 = m[:, four_h:] + b1                 # layer 1, step t-1
            hh, cc = lstm_cell(jnp.concatenate([gates0, gates1], axis=0),
                               jnp.concatenate([c0, c1], axis=0))
            h0n, h1n = hh[:B], hh[B:]
            c0n, c1n = cc[:B], cc[B:]
            h1_ref[t - 1] = h1n                         # staged for deferred Linear+LN
            return h0n, c0n, h1n, c1n

        if TU > 1:
            h0, c0, h1, c1 = lax.fori_loop(1, TU, body, (h0, c0, h1, c1),
                                           unroll=unroll)

        # ---- epilogue: layer-1 local step TU-1 -------------------------------
        m = step_mm(h0, h1)
        h1, c1 = lstm_cell(m[:, four_h:] + b1, c1)
        h1_ref[TU - 1] = h1

        # ---- deferred Linear + output LayerNorm: one slab per chunk ----------
        # lstm_dropout: identity in eval mode.
        y = _mm(h1_ref[...].reshape(TU * B, H), lin_w_ref[...]) + lin_b_ref[...]
        y = _layernorm(y, ln_out_g_ref[...], ln_out_b_ref[...])
        y_ref[...] = y.reshape(TU, B, O)

        # ---- carry state to the next chunk / export final state --------------
        state_ref[0] = h0
        state_ref[1] = c0
        state_ref[2] = h1
        state_ref[3] = c1
        h_out_ref[0] = h0
        c_out_ref[0] = c0
        h_out_ref[1] = h1
        c_out_ref[1] = c1

    return kernel


def _pick_time_chunk(U, max_chunk):
    """Largest divisor of U that is <= max_chunk (keeps the grid exact)."""
    max_chunk = max(1, min(U, int(max_chunk)))
    for d in range(max_chunk, 0, -1):
        if U % d == 0:
            return d
    return U


def _vmem_limit_bytes(request_bytes):
    # Generation-aware cap: leave headroom for compiler-internal scratch and
    # pipeline buffers (matters on v7x where physical VMEM is 64 MiB).
    try:
        cap = int(pltpu.get_tpu_info().vmem_capacity_bytes)
    except Exception:
        cap = 64 * 1024 * 1024
    return int(min((cap * 3) // 4, max(8 * 1024 * 1024, 2 * int(request_bytes))))


def prepare_params(params):
    """One-time (outside jit) weight prep: transpose to (in, out), cast matmul
    weights to bf16, and build the merged per-step weight
    W_step = [[Whh0, Wih1], [0, Whh1]]  (2H, 8H)."""
    H = params["whh0"].shape[1]

    def t_bf16(w):                       # torch (out, in) -> (in, out) bf16
        return jnp.transpose(w, (1, 0)).astype(_MM_DTYPE)

    whh0 = t_bf16(params["whh0"])        # (H, 4H)
    wih1 = t_bf16(params["wih1"])        # (H, 4H)
    whh1 = t_bf16(params["whh1"])        # (H, 4H)
    w_step = jnp.concatenate(
        [jnp.concatenate([whh0, wih1], axis=1),
         jnp.concatenate([jnp.zeros((H, 4 * H), _MM_DTYPE), whh1], axis=1)],
        axis=0)                          # (2H, 8H)

    return {
        "embedding": params["embedding"].astype(jnp.float32),
        "ln_in_g": params["ln_in_g"], "ln_in_b": params["ln_in_b"],
        "wih0": t_bf16(params["wih0"]),  # (E, 4H)
        "w_step": w_step,
        "b0": params["b0"], "b1": params["b1"],
        "lin_w": t_bf16(params["lin_w"]),  # (H, O)
        "lin_b": params["lin_b"],
        "ln_out_g": params["ln_out_g"], "ln_out_b": params["ln_out_b"],
    }


def predictor_forward(tokens, lengths, kp, *, time_chunk=8):
    """tokens: (B, U) int32 in [0, V); lengths: (B,) int32; kp: prepare_params output.

    Returns (output (B, U, O), lengths, state_out) matching the torch module
    in eval mode (state=None path).  `lengths` is intentionally unused by the
    recurrence — this matches torch nn.LSTM on padded (non-packed) input.
    """
    B, U = tokens.shape
    E = kp["wih0"].shape[0]
    H = kp["lin_w"].shape[0]
    O = kp["lin_w"].shape[1]

    TU = _pick_time_chunk(U, time_chunk)
    num_chunks = U // TU

    # Embedding gather kept as plain-JAX glue; produce time-major (U, B, E).
    tokens_tb = jnp.transpose(tokens, (1, 0))
    emb = jnp.take(kp["embedding"], tokens_tb, axis=0).astype(jnp.float32)

    kernel = _make_predictor_kernel(TU, B, E, H, O)

    def resident(shape):
        zeros = (0,) * len(shape)
        return pl.BlockSpec(shape, lambda c: zeros)

    in_specs = [
        pl.BlockSpec((TU, B, E), lambda c: (c, 0, 0)),   # emb: pipelined per chunk
        resident((1, E)), resident((1, E)),              # input LayerNorm
        resident((E, 4 * H)),                            # wih0
        resident((2 * H, 8 * H)),                        # merged step weight
        resident((1, 4 * H)), resident((1, 4 * H)),      # b0, b1
        resident((H, O)), resident((1, O)),              # linear
        resident((1, O)), resident((1, O)),              # output LayerNorm
    ]
    out_specs = (
        pl.BlockSpec((TU, B, O), lambda c: (c, 0, 0)),   # y: pipelined per chunk
        resident((2, B, H)),                             # final h per layer
        resident((2, B, H)),                             # final c per layer
    )
    scratch_shapes = [
        pltpu.VMEM((TU, B, 4 * H), jnp.float32),         # layer-0 input projection
        pltpu.VMEM((TU, B, H), jnp.float32),             # layer-1 outputs of the chunk
        pltpu.VMEM((4, B, H), jnp.float32),              # persistent h0,c0,h1,c1
    ]

    # Advisory cost / VMEM sizing for XLA scheduling around the kernel.
    flops = int(U * B * (8 * E * H + 32 * H * H + 2 * H * O))
    transcendentals = int(10 * U * B * H)
    w_bytes = 2 * (E * 4 * H + 2 * H * 8 * H + H * O)
    small_bytes = 4 * (2 * E + 2 * 4 * H + 3 * O)
    io_bytes = 4 * (U * B * E + U * B * O + 4 * B * H)
    bytes_accessed = int(io_bytes + w_bytes + small_bytes)
    chunk_bytes = (2 * 4 * (TU * B * E + TU * B * O)          # double-buffered blocks
                   + w_bytes + small_bytes
                   + 4 * (TU * B * 4 * H + TU * B * H + 4 * B * H)
                   + 2 * 4 * 2 * B * H)
    vmem_limit = _vmem_limit_bytes(chunk_bytes)

    y_tb, h_out, c_out = pl.pallas_call(
        kernel,
        out_shape=(jax.ShapeDtypeStruct((U, B, O), jnp.float32),
                   jax.ShapeDtypeStruct((2, B, H), jnp.float32),
                   jax.ShapeDtypeStruct((2, B, H), jnp.float32)),
        grid_spec=pltpu.PrefetchScalarGridSpec(
            num_scalar_prefetch=0,
            grid=(num_chunks,),
            in_specs=in_specs,
            out_specs=out_specs,
            scratch_shapes=scratch_shapes),
        compiler_params=pltpu.CompilerParams(
            dimension_semantics=("arbitrary",),          # serial recurrence over time
            vmem_limit_bytes=vmem_limit),
        cost_estimate=pl.CostEstimate(flops=flops,
                                      transcendentals=transcendentals,
                                      bytes_accessed=bytes_accessed),
    )(emb,
      kp["ln_in_g"], kp["ln_in_b"],
      kp["wih0"], kp["w_step"], kp["b0"], kp["b1"],
      kp["lin_w"], kp["lin_b"],
      kp["ln_out_g"], kp["ln_out_b"])

    y = jnp.transpose(y_tb, (1, 0, 2))                   # (B, U, O)
    # torch: each layer's (h, c) permuted (1, 0, 2) -> (B, num_layers=1, H)
    state_out = [[h_out[l][:, None, :], c_out[l][:, None, :]] for l in range(2)]
    return y, lengths, state_out


predictor_forward = jax.jit(predictor_forward, static_argnames=("time_chunk",))


def init_params(key, V, E, H, O):
    ks = jax.random.split(key, 8)
    k = 1.0 / float(H) ** 0.5

    def uni(kk, shape):
        return jax.random.uniform(kk, shape, jnp.float32, -k, k)

    return {
        "embedding": jax.random.normal(ks[0], (V, E), jnp.float32),
        "ln_in_g": jnp.ones((1, E), jnp.float32),
        "ln_in_b": jnp.zeros((1, E), jnp.float32),
        # b* = b_ih + b_hh combined (PyTorch keeps them separate but they only add;
        # when importing real torch weights, add the two biases here).
        "wih0": uni(ks[1], (4 * H, E)),
        "whh0": uni(ks[2], (4 * H, H)),
        "b0": uni(ks[3], (1, 4 * H)),
        "wih1": uni(ks[4], (4 * H, H)),
        "whh1": uni(ks[5], (4 * H, H)),
        "b1": uni(ks[6], (1, 4 * H)),
        "lin_w": uni(ks[7], (O, H)),
        "lin_b": jnp.zeros((1, O), jnp.float32),
        "ln_out_g": jnp.ones((1, O), jnp.float32),
        "ln_out_b": jnp.zeros((1, O), jnp.float32),
    }


def _reference_forward(tokens, params):
    """Straightforward per-step JAX reference (same bf16 matmul casts)."""
    B, U = tokens.shape
    H = params["whh0"].shape[1]
    emb = jnp.take(params["embedding"], tokens.T, axis=0).astype(jnp.float32)
    x = _layernorm(emb, params["ln_in_g"], params["ln_in_b"])

    def mm(a, w):                                   # w in torch (out, in) layout
        return jnp.dot(a.astype(_MM_DTYPE), jnp.transpose(w).astype(_MM_DTYPE),
                       preferred_element_type=jnp.float32)

    def cell(gates, c):
        i = jax.nn.sigmoid(gates[:, 0:H])
        f = jax.nn.sigmoid(gates[:, H:2 * H])
        g = jnp.tanh(gates[:, 2 * H:3 * H])
        o = jax.nn.sigmoid(gates[:, 3 * H:4 * H])
        c_new = f * c + i * g
        return o * jnp.tanh(c_new), c_new

    z = jnp.zeros((B, H), jnp.float32)
    h0, c0, h1, c1 = z, z, z, z
    ys = []
    for t in range(U):
        h0, c0 = cell(mm(x[t], params["wih0"]) + params["b0"] + mm(h0, params["whh0"]), c0)
        h1, c1 = cell(mm(h0, params["wih1"]) + params["b1"] + mm(h1, params["whh1"]), c1)
        ys.append(_layernorm(mm(h1, params["lin_w"]) + params["lin_b"],
                             params["ln_out_g"], params["ln_out_b"]))
    y = jnp.transpose(jnp.stack(ys, axis=0), (1, 0, 2))   # (B, U, O)
    return y, (h0, c0, h1, c1)


if __name__ == "__main__":
    B, U = 2, 8
    V = 16            # label_target_size
    E = 32            # symbol_embedding_dim
    H = 32            # lstm_hidden_dim   (4H = 128 -> lane-dense gate matmuls)
    O = 32            # output_dim
    # num_lstm_layers = 2 (hard-coded in the kernel)

    key = jax.random.PRNGKey(0)
    k_tok, k_par = jax.random.split(key)
    tokens = jax.random.randint(k_tok, (B, U), 0, V, dtype=jnp.int32)
    lengths = jnp.array([U, U - 3], dtype=jnp.int32)
    params = init_params(k_par, V, E, H, O)
    kparams = prepare_params(params)      # one-time weight prep, outside jit

    # time_chunk=4 -> 2 grid steps, exercising the cross-chunk state carry.
    y, out_lengths, state_out = predictor_forward(tokens, lengths, kparams, time_chunk=4)
    y = jax.block_until_ready(y)
    jax.block_until_ready(state_out)

    assert y.shape == (B, U, O)
    assert out_lengths.shape == (B,)
    assert state_out[0][0].shape == (B, 1, H)
    assert state_out[1][1].shape == (B, 1, H)
    assert bool(jnp.all(jnp.isfinite(y)))

    # Structural self-check against a straightforward per-step JAX reference.
    y_exp, (h0r, c0r, h1r, c1r) = _reference_forward(tokens, params)
    tol = 2e-2
    assert float(jnp.max(jnp.abs(y - y_exp))) < tol
    assert float(jnp.max(jnp.abs(state_out[0][0][:, 0, :] - h0r))) < tol
    assert float(jnp.max(jnp.abs(state_out[0][1][:, 0, :] - c0r))) < tol
    assert float(jnp.max(jnp.abs(state_out[1][0][:, 0, :] - h1r))) < tol
    assert float(jnp.max(jnp.abs(state_out[1][1][:, 0, :] - c1r))) < tol

    print("KERNEL_OK")
</pallas_src>

<mosaic_0001>
module attributes {stable_mosaic.version = 11 : i64} {
  func.func @kernel(%arg0: i32, %arg1: memref<4x2x32xf32, #tpu.memory_space<vmem>>, %arg2: memref<1x32xf32, #tpu.memory_space<vmem>>, %arg3: memref<1x32xf32, #tpu.memory_space<vmem>>, %arg4: memref<32x128xbf16, #tpu.memory_space<vmem>>, %arg5: memref<64x256xbf16, #tpu.memory_space<vmem>>, %arg6: memref<1x128xf32, #tpu.memory_space<vmem>>, %arg7: memref<1x128xf32, #tpu.memory_space<vmem>>, %arg8: memref<32x32xbf16, #tpu.memory_space<vmem>>, %arg9: memref<1x32xf32, #tpu.memory_space<vmem>>, %arg10: memref<1x32xf32, #tpu.memory_space<vmem>>, %arg11: memref<1x32xf32, #tpu.memory_space<vmem>>, %arg12: memref<4x2x32xf32, #tpu.memory_space<vmem>>, %arg13: memref<2x2x32xf32, #tpu.memory_space<vmem>>, %arg14: memref<2x2x32xf32, #tpu.memory_space<vmem>>, %arg15: memref<4x2x128xf32, #tpu.memory_space<vmem>>, %arg16: memref<4x2x32xf32, #tpu.memory_space<vmem>>, %arg17: memref<4x2x32xf32, #tpu.memory_space<vmem>>) attributes {dimension_semantics = [#tpu.dimension_semantics<arbitrary>], iteration_bounds = array<i64: 2>, scalar_prefetch = 0 : i64, scratch_operands = 3 : i64, tpu.core_type = #tpu.core_type<tc>, window_params = [{transform_indices = @transform_0, window_bounds = array<i64: 4, 2, 32>}, {pipeline_mode = #tpu.pipeline_mode<synchronous>, transform_indices = @transform_1, window_bounds = array<i64: 1, 32>}, {pipeline_mode = #tpu.pipeline_mode<synchronous>, transform_indices = @transform_2, window_bounds = array<i64: 1, 32>}, {pipeline_mode = #tpu.pipeline_mode<synchronous>, transform_indices = @transform_3, window_bounds = array<i64: 32, 128>}, {pipeline_mode = #tpu.pipeline_mode<synchronous>, transform_indices = @transform_4, window_bounds = array<i64: 64, 256>}, {pipeline_mode = #tpu.pipeline_mode<synchronous>, transform_indices = @transform_5, window_bounds = array<i64: 1, 128>}, {pipeline_mode = #tpu.pipeline_mode<synchronous>, transform_indices = @transform_6, window_bounds = array<i64: 1, 128>}, {pipeline_mode = #tpu.pipeline_mode<synchronous>, transform_indices = @transform_7, window_bounds = array<i64: 32, 32>}, {pipeline_mode = #tpu.pipeline_mode<synchronous>, transform_indices = @transform_8, window_bounds = array<i64: 1, 32>}, {pipeline_mode = #tpu.pipeline_mode<synchronous>, transform_indices = @transform_9, window_bounds = array<i64: 1, 32>}, {pipeline_mode = #tpu.pipeline_mode<synchronous>, transform_indices = @transform_10, window_bounds = array<i64: 1, 32>}, {transform_indices = @transform_11, window_bounds = array<i64: 4, 2, 32>}, {pipeline_mode = #tpu.pipeline_mode<synchronous>, transform_indices = @transform_12, window_bounds = array<i64: 2, 2, 32>}, {pipeline_mode = #tpu.pipeline_mode<synchronous>, transform_indices = @transform_13, window_bounds = array<i64: 2, 2, 32>}]} {
    %c0_i32 = arith.constant 0 : i32
    %0 = arith.cmpi eq, %arg0, %c0_i32 : i32
    %1 = arith.extui %0 : i1 to i32
    %c0_i32_0 = arith.constant 0 : i32
    %2 = arith.cmpi ne, %1, %c0_i32_0 : i32
    scf.if %2 {
      %cst_120 = arith.constant 0.000000e+00 : f32
      %298 = vector.broadcast %cst_120 : f32 to vector<4x2x32xf32>
      %c0_121 = arith.constant 0 : index
      %c0_122 = arith.constant 0 : index
      %c0_123 = arith.constant 0 : index
      %299 = vector.load %arg17[%c0_121, %c0_122, %c0_123] : memref<4x2x32xf32, #tpu.memory_space<vmem>>, vector<4x2x32xf32>
      tpu.vector_store %arg17[%c0_121, %c0_122, %c0_123], %298 {strides = array<i32>} : memref<4x2x32xf32, #tpu.memory_space<vmem>>, vector<4x2x32xf32>,
    } else {
    }
    %c0 = arith.constant 0 : index
    %c0_1 = arith.constant 0 : index
    %c0_2 = arith.constant 0 : index
    %3 = vector.load %arg1[%c0, %c0_1, %c0_2] : memref<4x2x32xf32, #tpu.memory_space<vmem>>, vector<4x2x32xf32>
    %c0_3 = arith.constant 0 : index
    %c0_4 = arith.constant 0 : index
    %4 = vector.load %arg2[%c0_3, %c0_4] : memref<1x32xf32, #tpu.memory_space<vmem>>, vector<1x32xf32>
    %c0_5 = arith.constant 0 : index
    %c0_6 = arith.constant 0 : index
    %5 = vector.load %arg3[%c0_5, %c0_6] : memref<1x32xf32, #tpu.memory_space<vmem>>, vector<1x32xf32>
    %cst = arith.constant dense<0.000000e+00> : vector<4x2xf32>
    %6 = vector.multi_reduction <add>, %3, %cst [2] : vector<4x2x32xf32> to vector<4x2xf32>
    %7 = vector.shape_cast %6 : vector<4x2xf32> to vector<4x2x1xf32>
    %cst_7 = arith.constant 3.200000e+01 : f32
    %8 = vector.broadcast %cst_7 : f32 to vector<4x2x1xf32>
    %9 = arith.divf %7, %8 : vector<4x2x1xf32>
    %10 = vector.broadcast %9 : vector<4x2x1xf32> to vector<4x2x32xf32>
    %11 = arith.subf %3, %10 : vector<4x2x32xf32>
    %12 = arith.mulf %11, %11 : vector<4x2x32xf32>
    %cst_8 = arith.constant dense<0.000000e+00> : vector<4x2xf32>
    %13 = vector.multi_reduction <add>, %12, %cst_8 [2] : vector<4x2x32xf32> to vector<4x2xf32>
    %14 = vector.shape_cast %13 : vector<4x2xf32> to vector<4x2x1xf32>
    %cst_9 = arith.constant 3.200000e+01 : f32
    %15 = vector.broadcast %cst_9 : f32 to vector<4x2x1xf32>
    %16 = arith.divf %14, %15 : vector<4x2x1xf32>
    %17 = vector.broadcast %9 : vector<4x2x1xf32> to vector<4x2x32xf32>
    %18 = arith.subf %3, %17 : vector<4x2x32xf32>
    %cst_10 = arith.constant 9.99999974E-6 : f32
    %19 = vector.broadcast %cst_10 : f32 to vector<4x2x1xf32>
    %20 = arith.addf %16, %19 : vector<4x2x1xf32>
    %21 = math.rsqrt %20 : vector<4x2x1xf32>
    %22 = vector.broadcast %21 : vector<4x2x1xf32> to vector<4x2x32xf32>
    %23 = arith.mulf %18, %22 : vector<4x2x32xf32>
    %24 = vector.shape_cast %4 : vector<1x32xf32> to vector<1x1x32xf32>
    %25 = vector.broadcast %24 : vector<1x1x32xf32> to vector<4x2x32xf32>
    %26 = arith.mulf %23, %25 : vector<4x2x32xf32>
    %27 = vector.shape_cast %5 : vector<1x32xf32> to vector<1x1x32xf32>
    %28 = vector.broadcast %27 : vector<1x1x32xf32> to vector<4x2x32xf32>
    %29 = arith.addf %26, %28 : vector<4x2x32xf32>
    %30 = vector.shape_cast %29 : vector<4x2x32xf32> to vector<8x32xf32>
    %c0_11 = arith.constant 0 : index
    %c0_12 = arith.constant 0 : index
    %31 = vector.load %arg4[%c0_11, %c0_12] : memref<32x128xbf16, #tpu.memory_space<vmem>>, vector<32x128xbf16>
    %32 = arith.truncf %30 : vector<8x32xf32> to vector<8x32xbf16>
    %cst_13 = arith.constant dense<0.000000e+00> : vector<8x128xf32>
    %33 = tpu.matmul %32, %31, %cst_13 {dimension_numbers = #tpu.dot_dimension_numbers<[1], [0], [0], [1], [0, 0, 1, 1], [], []>} : vector<8x32xbf16>, vector<32x128xbf16>, vector<8x128xf32> -> vector<8x128xf32>
    %c0_14 = arith.constant 0 : index
    %c0_15 = arith.constant 0 : index
    %34 = vector.load %arg6[%c0_14, %c0_15] : memref<1x128xf32, #tpu.memory_space<vmem>>, vector<1x128xf32>
    %35 = vector.broadcast %34 : vector<1x128xf32> to vector<8x128xf32>
    %36 = arith.addf %33, %35 : vector<8x128xf32>
    %37 = vector.shape_cast %36 : vector<8x128xf32> to vector<4x2x128xf32>
    %c0_16 = arith.constant 0 : index
    %c0_17 = arith.constant 0 : index
    %c0_18 = arith.constant 0 : index
    %38 = vector.load %arg15[%c0_16, %c0_17, %c0_18] : memref<4x2x128xf32, #tpu.memory_space<vmem>>, vector<4x2x128xf32>
    tpu.vector_store %arg15[%c0_16, %c0_17, %c0_18], %37 {strides = array<i32>} : memref<4x2x128xf32, #tpu.memory_space<vmem>>, vector<4x2x128xf32>,
    %c0_19 = arith.constant 0 : index
    %c0_20 = arith.constant 0 : index
    %39 = vector.load %arg5[%c0_19, %c0_20] : memref<64x256xbf16, #tpu.memory_space<vmem>>, vector<64x256xbf16>
    %c0_21 = arith.constant 0 : index
    %c0_22 = arith.constant 0 : index
    %40 = vector.load %arg7[%c0_21, %c0_22] : memref<1x128xf32, #tpu.memory_space<vmem>>, vector<1x128xf32>
    %41 = tpu.iota {dimensions = array<i32: 1>} : vector<1x128xi32>
    %c64_i32 = arith.constant 64 : i32
    %42 = vector.broadcast %c64_i32 : i32 to vector<1x128xi32>
    %43 = arith.cmpi sge, %41, %42 : vector<1x128xi32>
    %c96_i32 = arith.constant 96 : i32
    %44 = vector.broadcast %c96_i32 : i32 to vector<1x128xi32>
    %45 = arith.cmpi slt, %41, %44 : vector<1x128xi32>
    %46 = arith.andi %43, %45 : vector<1x128xi1>
    %cst_23 = arith.constant 2.000000e+00 : f32
    %cst_24 = arith.constant 1.000000e+00 : f32
    %47 = vector.broadcast %cst_23 : f32 to vector<1x128xf32>
    %48 = vector.broadcast %cst_24 : f32 to vector<1x128xf32>
    %49 = arith.select %46, %47, %48 : vector<1x128xi1>, vector<1x128xf32>
    %c0_25 = arith.constant 0 : index
    %c0_26 = arith.constant 0 : index
    %c0_27 = arith.constant 0 : index
    %50 = vector.load %arg17[%c0_25, %c0_26, %c0_27] : memref<4x2x32xf32, #tpu.memory_space<vmem>>, vector<1x2x32xf32>
    %51 = vector.shape_cast %50 : vector<1x2x32xf32> to vector<2x32xf32>
    %c1 = arith.constant 1 : index
    %c0_28 = arith.constant 0 : index
    %c0_29 = arith.constant 0 : index
    %52 = vector.load %arg17[%c1, %c0_28, %c0_29] : memref<4x2x32xf32, #tpu.memory_space<vmem>>, vector<1x2x32xf32>
    %53 = vector.shape_cast %52 : vector<1x2x32xf32> to vector<2x32xf32>
    %c2 = arith.constant 2 : index
    %c0_30 = arith.constant 0 : index
    %c0_31 = arith.constant 0 : index
    %54 = vector.load %arg17[%c2, %c0_30, %c0_31] : memref<4x2x32xf32, #tpu.memory_space<vmem>>, vector<1x2x32xf32>
    %55 = vector.shape_cast %54 : vector<1x2x32xf32> to vector<2x32xf32>
    %c3 = arith.constant 3 : index
    %c0_32 = arith.constant 0 : index
    %c0_33 = arith.constant 0 : index
    %56 = vector.load %arg17[%c3, %c0_32, %c0_33] : memref<4x2x32xf32, #tpu.memory_space<vmem>>, vector<1x2x32xf32>
    %57 = vector.shape_cast %56 : vector<1x2x32xf32> to vector<2x32xf32>
    %58 = tpu.concatenate %51, %55 in 1 : vector<2x32xf32>, vector<2x32xf32> -> vector<2x64xf32>
    %59 = arith.truncf %58 : vector<2x64xf32> to vector<2x64xbf16>
    %cst_34 = arith.constant dense<0.000000e+00> : vector<2x256xf32>
    %60 = tpu.matmul %59, %39, %cst_34 {dimension_numbers = #tpu.dot_dimension_numbers<[1], [0], [0], [1], [0, 0, 1, 1], [], []>} : vector<2x64xbf16>, vector<64x256xbf16>, vector<2x256xf32> -> vector<2x256xf32>
    %c0_35 = arith.constant 0 : index
    %c0_36 = arith.constant 0 : index
    %c0_37 = arith.constant 0 : index
    %61 = vector.load %arg15[%c0_35, %c0_36, %c0_37] : memref<4x2x128xf32, #tpu.memory_space<vmem>>, vector<1x2x128xf32>
    %62 = vector.shape_cast %61 : vector<1x2x128xf32> to vector<2x128xf32>
    %63 = vector.extract_strided_slice %60 {offsets = [0, 0], sizes = [2, 128], strides = [1, 1]} : vector<2x256xf32> to vector<2x128xf32>
    %64 = arith.addf %62, %63 : vector<2x128xf32>
    %65 = vector.broadcast %49 : vector<1x128xf32> to vector<2x128xf32>
    %66 = arith.mulf %64, %65 : vector<2x128xf32>
    %67 = arith.negf %66 : vector<2x128xf32>
    %68 = math.exp %67 : vector<2x128xf32>
    %cst_38 = arith.constant 1.000000e+00 : f32
    %69 = vector.broadcast %cst_38 : f32 to vector<2x128xf32>
    %70 = arith.addf %69, %68 : vector<2x128xf32>
    %71 = arith.divf %69, %70 : vector<2x128xf32>
    %72 = vector.extract_strided_slice %71 {offsets = [0, 0], sizes = [2, 32], strides = [1, 1]} : vector<2x128xf32> to vector<2x32xf32>
    %73 = vector.extract_strided_slice %71 {offsets = [0, 32], sizes = [2, 32], strides = [1, 1]} : vector<2x128xf32> to vector<2x32xf32>
    %74 = vector.extract_strided_slice %71 {offsets = [0, 64], sizes = [2, 32], strides = [1, 1]} : vector<2x128xf32> to vector<2x32xf32>
    %cst_39 = arith.constant 2.000000e+00 : f32
    %75 = vector.broadcast %cst_39 : f32 to vector<2x32xf32>
    %76 = arith.mulf %75, %74 : vector<2x32xf32>
    %cst_40 = arith.constant 1.000000e+00 : f32
    %77 = vector.broadcast %cst_40 : f32 to vector<2x32xf32>
    %78 = arith.subf %76, %77 : vector<2x32xf32>
    %79 = vector.extract_strided_slice %71 {offsets = [0, 96], sizes = [2, 32], strides = [1, 1]} : vector<2x128xf32> to vector<2x32xf32>
    %80 = arith.mulf %73, %53 : vector<2x32xf32>
    %81 = arith.mulf %72, %78 : vector<2x32xf32>
    %82 = arith.addf %80, %81 : vector<2x32xf32>
    %83 = math.tanh %82 : vector<2x32xf32>
    %84 = arith.mulf %79, %83 : vector<2x32xf32>
    %c1_i32 = arith.constant 1 : i32
    %85 = tpu.concatenate %84, %55 in 1 : vector<2x32xf32>, vector<2x32xf32> -> vector<2x64xf32>
    %86 = arith.truncf %85 : vector<2x64xf32> to vector<2x64xbf16>
    %cst_41 = arith.constant dense<0.000000e+00> : vector<2x256xf32>
    %87 = tpu.matmul %86, %39, %cst_41 {dimension_numbers = #tpu.dot_dimension_numbers<[1], [0], [0], [1], [0, 0, 1, 1], [], []>} : vector<2x64xbf16>, vector<64x256xbf16>, vector<2x256xf32> -> vector<2x256xf32>
    %88 = arith.index_cast %c1_i32 : i32 to index
    %c0_42 = arith.constant 0 : index
    %c0_43 = arith.constant 0 : index
    %89 = vector.load %arg15[%88, %c0_42, %c0_43] : memref<4x2x128xf32, #tpu.memory_space<vmem>>, vector<1x2x128xf32>
    %90 = vector.shape_cast %89 : vector<1x2x128xf32> to vector<2x128xf32>
    %91 = vector.extract_strided_slice %87 {offsets = [0, 0], sizes = [2, 128], strides = [1, 1]} : vector<2x256xf32> to vector<2x128xf32>
    %92 = arith.addf %90, %91 : vector<2x128xf32>
    %93 = vector.extract_strided_slice %87 {offsets = [0, 128], sizes = [2, 128], strides = [1, 1]} : vector<2x256xf32> to vector<2x128xf32>
    %94 = vector.broadcast %40 : vector<1x128xf32> to vector<2x128xf32>
    %95 = arith.addf %93, %94 : vector<2x128xf32>
    %96 = tpu.concatenate %92, %95 in 0 : vector<2x128xf32>, vector<2x128xf32> -> vector<4x128xf32>
    %97 = tpu.concatenate %82, %57 in 0 : vector<2x32xf32>, vector<2x32xf32> -> vector<4x32xf32>
    %98 = vector.broadcast %49 : vector<1x128xf32> to vector<4x128xf32>
    %99 = arith.mulf %96, %98 : vector<4x128xf32>
    %100 = arith.negf %99 : vector<4x128xf32>
    %101 = math.exp %100 : vector<4x128xf32>
    %cst_44 = arith.constant 1.000000e+00 : f32
    %102 = vector.broadcast %cst_44 : f32 to vector<4x128xf32>
    %103 = arith.addf %102, %101 : vector<4x128xf32>
    %104 = arith.divf %102, %103 : vector<4x128xf32>
    %105 = vector.extract_strided_slice %104 {offsets = [0, 0], sizes = [4, 32], strides = [1, 1]} : vector<4x128xf32> to vector<4x32xf32>
    %106 = vector.extract_strided_slice %104 {offsets = [0, 32], sizes = [4, 32], strides = [1, 1]} : vector<4x128xf32> to vector<4x32xf32>
    %107 = vector.extract_strided_slice %104 {offsets = [0, 64], sizes = [4, 32], strides = [1, 1]} : vector<4x128xf32> to vector<4x32xf32>
    %cst_45 = arith.constant 2.000000e+00 : f32
    %108 = vector.broadcast %cst_45 : f32 to vector<4x32xf32>
    %109 = arith.mulf %108, %107 : vector<4x32xf32>
    %cst_46 = arith.constant 1.000000e+00 : f32
    %110 = vector.broadcast %cst_46 : f32 to vector<4x32xf32>
    %111 = arith.subf %109, %110 : vector<4x32xf32>
    %112 = vector.extract_strided_slice %104 {offsets = [0, 96], sizes = [4, 32], strides = [1, 1]} : vector<4x128xf32> to vector<4x32xf32>
    %113 = arith.mulf %106, %97 : vector<4x32xf32>
    %114 = arith.mulf %105, %111 : vector<4x32xf32>
    %115 = arith.addf %113, %114 : vector<4x32xf32>
    %116 = math.tanh %115 : vector<4x32xf32>
    %117 = arith.mulf %112, %116 : vector<4x32xf32>
    %118 = vector.extract_strided_slice %117 {offsets = [0, 0], sizes = [2, 32], strides = [1, 1]} : vector<4x32xf32> to vector<2x32xf32>
    %119 = vector.extract_strided_slice %117 {offsets = [2, 0], sizes = [2, 32], strides = [1, 1]} : vector<4x32xf32> to vector<2x32xf32>
    %120 = vector.extract_strided_slice %115 {offsets = [0, 0], sizes = [2, 32], strides = [1, 1]} : vector<4x32xf32> to vector<2x32xf32>
    %121 = vector.extract_strided_slice %115 {offsets = [2, 0], sizes = [2, 32], strides = [1, 1]} : vector<4x32xf32> to vector<2x32xf32>
    %c1_i32_47 = arith.constant 1 : i32
    %122 = arith.subi %c1_i32, %c1_i32_47 : i32
    %123 = arith.index_cast %122 : i32 to index
    %c0_48 = arith.constant 0 : index
    %c0_49 = arith.constant 0 : index
    %124 = vector.load %arg16[%123, %c0_48, %c0_49] : memref<4x2x32xf32, #tpu.memory_space<vmem>>, vector<1x2x32xf32>
    %125 = vector.shape_cast %124 : vector<1x2x32xf32> to vector<2x32xf32>
    %126 = vector.shape_cast %119 : vector<2x32xf32> to vector<1x2x32xf32>
    tpu.vector_store %arg16[%123, %c0_48, %c0_49], %126 {strides = array<i32>} : memref<4x2x32xf32, #tpu.memory_space<vmem>>, vector<1x2x32xf32>,
    %c2_i32 = arith.constant 2 : i32
    %127 = tpu.concatenate %118, %119 in 1 : vector<2x32xf32>, vector<2x32xf32> -> vector<2x64xf32>
    %128 = arith.truncf %127 : vector<2x64xf32> to vector<2x64xbf16>
    %cst_50 = arith.constant dense<0.000000e+00> : vector<2x256xf32>
    %129 = tpu.matmul %128, %39, %cst_50 {dimension_numbers = #tpu.dot_dimension_numbers<[1], [0], [0], [1], [0, 0, 1, 1], [], []>} : vector<2x64xbf16>, vector<64x256xbf16>, vector<2x256xf32> -> vector<2x256xf32>
    %130 = arith.index_cast %c2_i32 : i32 to index
    %c0_51 = arith.constant 0 : index
    %c0_52 = arith.constant 0 : index
    %131 = vector.load %arg15[%130, %c0_51, %c0_52] : memref<4x2x128xf32, #tpu.memory_space<vmem>>, vector<1x2x128xf32>
    %132 = vector.shape_cast %131 : vector<1x2x128xf32> to vector<2x128xf32>
    %133 = vector.extract_strided_slice %129 {offsets = [0, 0], sizes = [2, 128], strides = [1, 1]} : vector<2x256xf32> to vector<2x128xf32>
    %134 = arith.addf %132, %133 : vector<2x128xf32>
    %135 = vector.extract_strided_slice %129 {offsets = [0, 128], sizes = [2, 128], strides = [1, 1]} : vector<2x256xf32> to vector<2x128xf32>
    %136 = vector.broadcast %40 : vector<1x128xf32> to vector<2x128xf32>
    %137 = arith.addf %135, %136 : vector<2x128xf32>
    %138 = tpu.concatenate %134, %137 in 0 : vector<2x128xf32>, vector<2x128xf32> -> vector<4x128xf32>
    %139 = tpu.concatenate %120, %121 in 0 : vector<2x32xf32>, vector<2x32xf32> -> vector<4x32xf32>
    %140 = vector.broadcast %49 : vector<1x128xf32> to vector<4x128xf32>
    %141 = arith.mulf %138, %140 : vector<4x128xf32>
    %142 = arith.negf %141 : vector<4x128xf32>
    %143 = math.exp %142 : vector<4x128xf32>
    %cst_53 = arith.constant 1.000000e+00 : f32
    %144 = vector.broadcast %cst_53 : f32 to vector<4x128xf32>
    %145 = arith.addf %144, %143 : vector<4x128xf32>
    %146 = arith.divf %144, %145 : vector<4x128xf32>
    %147 = vector.extract_strided_slice %146 {offsets = [0, 0], sizes = [4, 32], strides = [1, 1]} : vector<4x128xf32> to vector<4x32xf32>
    %148 = vector.extract_strided_slice %146 {offsets = [0, 32], sizes = [4, 32], strides = [1, 1]} : vector<4x128xf32> to vector<4x32xf32>
    %149 = vector.extract_strided_slice %146 {offsets = [0, 64], sizes = [4, 32], strides = [1, 1]} : vector<4x128xf32> to vector<4x32xf32>
    %cst_54 = arith.constant 2.000000e+00 : f32
    %150 = vector.broadcast %cst_54 : f32 to vector<4x32xf32>
    %151 = arith.mulf %150, %149 : vector<4x32xf32>
    %cst_55 = arith.constant 1.000000e+00 : f32
    %152 = vector.broadcast %cst_55 : f32 to vector<4x32xf32>
    %153 = arith.subf %151, %152 : vector<4x32xf32>
    %154 = vector.extract_strided_slice %146 {offsets = [0, 96], sizes = [4, 32], strides = [1, 1]} : vector<4x128xf32> to vector<4x32xf32>
    %155 = arith.mulf %148, %139 : vector<4x32xf32>
    %156 = arith.mulf %147, %153 : vector<4x32xf32>
    %157 = arith.addf %155, %156 : vector<4x32xf32>
    %158 = math.tanh %157 : vector<4x32xf32>
    %159 = arith.mulf %154, %158 : vector<4x32xf32>
    %160 = vector.extract_strided_slice %159 {offsets = [0, 0], sizes = [2, 32], strides = [1, 1]} : vector<4x32xf32> to vector<2x32xf32>
    %161 = vector.extract_strided_slice %159 {offsets = [2, 0], sizes = [2, 32], strides = [1, 1]} : vector<4x32xf32> to vector<2x32xf32>
    %162 = vector.extract_strided_slice %157 {offsets = [0, 0], sizes = [2, 32], strides = [1, 1]} : vector<4x32xf32> to vector<2x32xf32>
    %163 = vector.extract_strided_slice %157 {offsets = [2, 0], sizes = [2, 32], strides = [1, 1]} : vector<4x32xf32> to vector<2x32xf32>
    %c1_i32_56 = arith.constant 1 : i32
    %164 = arith.subi %c2_i32, %c1_i32_56 : i32
    %165 = arith.index_cast %164 : i32 to index
    %c0_57 = arith.constant 0 : index
    %c0_58 = arith.constant 0 : index
    %166 = vector.load %arg16[%165, %c0_57, %c0_58] : memref<4x2x32xf32, #tpu.memory_space<vmem>>, vector<1x2x32xf32>
    %167 = vector.shape_cast %166 : vector<1x2x32xf32> to vector<2x32xf32>
    %168 = vector.shape_cast %161 : vector<2x32xf32> to vector<1x2x32xf32>
    tpu.vector_store %arg16[%165, %c0_57, %c0_58], %168 {strides = array<i32>} : memref<4x2x32xf32, #tpu.memory_space<vmem>>, vector<1x2x32xf32>,
    %c3_i32 = arith.constant 3 : i32
    %169 = tpu.concatenate %160, %161 in 1 : vector<2x32xf32>, vector<2x32xf32> -> vector<2x64xf32>
    %170 = arith.truncf %169 : vector<2x64xf32> to vector<2x64xbf16>
    %cst_59 = arith.constant dense<0.000000e+00> : vector<2x256xf32>
    %171 = tpu.matmul %170, %39, %cst_59 {dimension_numbers = #tpu.dot_dimension_numbers<[1], [0], [0], [1], [0, 0, 1, 1], [], []>} : vector<2x64xbf16>, vector<64x256xbf16>, vector<2x256xf32> -> vector<2x256xf32>
    %172 = arith.index_cast %c3_i32 : i32 to index
    %c0_60 = arith.constant 0 : index
    %c0_61 = arith.constant 0 : index
    %173 = vector.load %arg15[%172, %c0_60, %c0_61] : memref<4x2x128xf32, #tpu.memory_space<vmem>>, vector<1x2x128xf32>
    %174 = vector.shape_cast %173 : vector<1x2x128xf32> to vector<2x128xf32>
    %175 = vector.extract_strided_slice %171 {offsets = [0, 0], sizes = [2, 128], strides = [1, 1]} : vector<2x256xf32> to vector<2x128xf32>
    %176 = arith.addf %174, %175 : vector<2x128xf32>
    %177 = vector.extract_strided_slice %171 {offsets = [0, 128], sizes = [2, 128], strides = [1, 1]} : vector<2x256xf32> to vector<2x128xf32>
    %178 = vector.broadcast %40 : vector<1x128xf32> to vector<2x128xf32>
    %179 = arith.addf %177, %178 : vector<2x128xf32>
    %180 = tpu.concatenate %176, %179 in 0 : vector<2x128xf32>, vector<2x128xf32> -> vector<4x128xf32>
    %181 = tpu.concatenate %162, %163 in 0 : vector<2x32xf32>, vector<2x32xf32> -> vector<4x32xf32>
    %182 = vector.broadcast %49 : vector<1x128xf32> to vector<4x128xf32>
    %183 = arith.mulf %180, %182 : vector<4x128xf32>
    %184 = arith.negf %183 : vector<4x128xf32>
    %185 = math.exp %184 : vector<4x128xf32>
    %cst_62 = arith.constant 1.000000e+00 : f32
    %186 = vector.broadcast %cst_62 : f32 to vector<4x128xf32>
    %187 = arith.addf %186, %185 : vector<4x128xf32>
    %188 = arith.divf %186, %187 : vector<4x128xf32>
    %189 = vector.extract_strided_slice %188 {offsets = [0, 0], sizes = [4, 32], strides = [1, 1]} : vector<4x128xf32> to vector<4x32xf32>
    %190 = vector.extract_strided_slice %188 {offsets = [0, 32], sizes = [4, 32], strides = [1, 1]} : vector<4x128xf32> to vector<4x32xf32>
    %191 = vector.extract_strided_slice %188 {offsets = [0, 64], sizes = [4, 32], strides = [1, 1]} : vector<4x128xf32> to vector<4x32xf32>
    %cst_63 = arith.constant 2.000000e+00 : f32
    %192 = vector.broadcast %cst_63 : f32 to vector<4x32xf32>
    %193 = arith.mulf %192, %191 : vector<4x32xf32>
    %cst_64 = arith.constant 1.000000e+00 : f32
    %194 = vector.broadcast %cst_64 : f32 to vector<4x32xf32>
    %195 = arith.subf %193, %194 : vector<4x32xf32>
    %196 = vector.extract_strided_slice %188 {offsets = [0, 96], sizes = [4, 32], strides = [1, 1]} : vector<4x128xf32> to vector<4x32xf32>
    %197 = arith.mulf %190, %181 : vector<4x32xf32>
    %198 = arith.mulf %189, %195 : vector<4x32xf32>
    %199 = arith.addf %197, %198 : vector<4x32xf32>
    %200 = math.tanh %199 : vector<4x32xf32>
    %201 = arith.mulf %196, %200 : vector<4x32xf32>
    %202 = vector.extract_strided_slice %201 {offsets = [0, 0], sizes = [2, 32], strides = [1, 1]} : vector<4x32xf32> to vector<2x32xf32>
    %203 = vector.extract_strided_slice %201 {offsets = [2, 0], sizes = [2, 32], strides = [1, 1]} : vector<4x32xf32> to vector<2x32xf32>
    %204 = vector.extract_strided_slice %199 {offsets = [0, 0], sizes = [2, 32], strides = [1, 1]} : vector<4x32xf32> to vector<2x32xf32>
    %205 = vector.extract_strided_slice %199 {offsets = [2, 0], sizes = [2, 32], strides = [1, 1]} : vector<4x32xf32> to vector<2x32xf32>
    %c1_i32_65 = arith.constant 1 : i32
    %206 = arith.subi %c3_i32, %c1_i32_65 : i32
    %207 = arith.index_cast %206 : i32 to index
    %c0_66 = arith.constant 0 : index
    %c0_67 = arith.constant 0 : index
    %208 = vector.load %arg16[%207, %c0_66, %c0_67] : memref<4x2x32xf32, #tpu.memory_space<vmem>>, vector<1x2x32xf32>
    %209 = vector.shape_cast %208 : vector<1x2x32xf32> to vector<2x32xf32>
    %210 = vector.shape_cast %203 : vector<2x32xf32> to vector<1x2x32xf32>
    tpu.vector_store %arg16[%207, %c0_66, %c0_67], %210 {strides = array<i32>} : memref<4x2x32xf32, #tpu.memory_space<vmem>>, vector<1x2x32xf32>,
    %c3_i32_68 = arith.constant 3 : i32
    %211 = tpu.concatenate %202, %203 in 1 : vector<2x32xf32>, vector<2x32xf32> -> vector<2x64xf32>
    %212 = arith.truncf %211 : vector<2x64xf32> to vector<2x64xbf16>
    %cst_69 = arith.constant dense<0.000000e+00> : vector<2x256xf32>
    %213 = tpu.matmul %212, %39, %cst_69 {dimension_numbers = #tpu.dot_dimension_numbers<[1], [0], [0], [1], [0, 0, 1, 1], [], []>} : vector<2x64xbf16>, vector<64x256xbf16>, vector<2x256xf32> -> vector<2x256xf32>
    %214 = vector.extract_strided_slice %213 {offsets = [0, 128], sizes = [2, 128], strides = [1, 1]} : vector<2x256xf32> to vector<2x128xf32>
    %215 = vector.broadcast %40 : vector<1x128xf32> to vector<2x128xf32>
    %216 = arith.addf %214, %215 : vector<2x128xf32>
    %217 = vector.broadcast %49 : vector<1x128xf32> to vector<2x128xf32>
    %218 = arith.mulf %216, %217 : vector<2x128xf32>
    %219 = arith.negf %218 : vector<2x128xf32>
    %220 = math.exp %219 : vector<2x128xf32>
    %cst_70 = arith.constant 1.000000e+00 : f32
    %221 = vector.broadcast %cst_70 : f32 to vector<2x128xf32>
    %222 = arith.addf %221, %220 : vector<2x128xf32>
    %223 = arith.divf %221, %222 : vector<2x128xf32>
    %224 = vector.extract_strided_slice %223 {offsets = [0, 0], sizes = [2, 32], strides = [1, 1]} : vector<2x128xf32> to vector<2x32xf32>
    %225 = vector.extract_strided_slice %223 {offsets = [0, 32], sizes = [2, 32], strides = [1, 1]} : vector<2x128xf32> to vector<2x32xf32>
    %226 = vector.extract_strided_slice %223 {offsets = [0, 64], sizes = [2, 32], strides = [1, 1]} : vector<2x128xf32> to vector<2x32xf32>
    %cst_71 = arith.constant 2.000000e+00 : f32
    %227 = vector.broadcast %cst_71 : f32 to vector<2x32xf32>
    %228 = arith.mulf %227, %226 : vector<2x32xf32>
    %cst_72 = arith.constant 1.000000e+00 : f32
    %229 = vector.broadcast %cst_72 : f32 to vector<2x32xf32>
    %230 = arith.subf %228, %229 : vector<2x32xf32>
    %231 = vector.extract_strided_slice %223 {offsets = [0, 96], sizes = [2, 32], strides = [1, 1]} : vector<2x128xf32> to vector<2x32xf32>
    %232 = arith.mulf %225, %205 : vector<2x32xf32>
    %233 = arith.mulf %224, %230 : vector<2x32xf32>
    %234 = arith.addf %232, %233 : vector<2x32xf32>
    %235 = math.tanh %234 : vector<2x32xf32>
    %236 = arith.mulf %231, %235 : vector<2x32xf32>
    %c3_73 = arith.constant 3 : index
    %c0_74 = arith.constant 0 : index
    %c0_75 = arith.constant 0 : index
    %237 = vector.load %arg16[%c3_73, %c0_74, %c0_75] : memref<4x2x32xf32, #tpu.memory_space<vmem>>, vector<1x2x32xf32>
    %238 = vector.shape_cast %237 : vector<1x2x32xf32> to vector<2x32xf32>
    %239 = vector.shape_cast %236 : vector<2x32xf32> to vector<1x2x32xf32>
    tpu.vector_store %arg16[%c3_73, %c0_74, %c0_75], %239 {strides = array<i32>} : memref<4x2x32xf32, #tpu.memory_space<vmem>>, vector<1x2x32xf32>,
    %c0_76 = arith.constant 0 : index
    %c0_77 = arith.constant 0 : index
    %c0_78 = arith.constant 0 : index
    %240 = vector.load %arg16[%c0_76, %c0_77, %c0_78] : memref<4x2x32xf32, #tpu.memory_space<vmem>>, vector<4x2x32xf32>
    %241 = vector.shape_cast %240 : vector<4x2x32xf32> to vector<8x32xf32>
    %c0_79 = arith.constant 0 : index
    %c0_80 = arith.constant 0 : index
    %242 = vector.load %arg8[%c0_79, %c0_80] : memref<32x32xbf16, #tpu.memory_space<vmem>>, vector<32x32xbf16>
    %243 = arith.truncf %241 : vector<8x32xf32> to vector<8x32xbf16>
    %cst_81 = arith.constant dense<0.000000e+00> : vector<8x32xf32>
    %244 = tpu.matmul %243, %242, %cst_81 {dimension_numbers = #tpu.dot_dimension_numbers<[1], [0], [0], [1], [0, 0, 1, 1], [], []>} : vector<8x32xbf16>, vector<32x32xbf16>, vector<8x32xf32> -> vector<8x32xf32>
    %c0_82 = arith.constant 0 : index
    %c0_83 = arith.constant 0 : index
    %245 = vector.load %arg9[%c0_82, %c0_83] : memref<1x32xf32, #tpu.memory_space<vmem>>, vector<1x32xf32>
    %246 = vector.broadcast %245 : vector<1x32xf32> to vector<8x32xf32>
    %247 = arith.addf %244, %246 : vector<8x32xf32>
    %c0_84 = arith.constant 0 : index
    %c0_85 = arith.constant 0 : index
    %248 = vector.load %arg10[%c0_84, %c0_85] : memref<1x32xf32, #tpu.memory_space<vmem>>, vector<1x32xf32>
    %c0_86 = arith.constant 0 : index
    %c0_87 = arith.constant 0 : index
    %249 = vector.load %arg11[%c0_86, %c0_87] : memref<1x32xf32, #tpu.memory_space<vmem>>, vector<1x32xf32>
    %cst_88 = arith.constant dense<0.000000e+00> : vector<8xf32>
    %250 = vector.multi_reduction <add>, %247, %cst_88 [1] : vector<8x32xf32> to vector<8xf32>
    %251 = vector.shape_cast %250 : vector<8xf32> to vector<8x1xf32>
    %cst_89 = arith.constant 3.200000e+01 : f32
    %252 = vector.broadcast %cst_89 : f32 to vector<8x1xf32>
    %253 = arith.divf %251, %252 : vector<8x1xf32>
    %254 = vector.broadcast %253 : vector<8x1xf32> to vector<8x32xf32>
    %255 = arith.subf %247, %254 : vector<8x32xf32>
    %256 = arith.mulf %255, %255 : vector<8x32xf32>
    %cst_90 = arith.constant dense<0.000000e+00> : vector<8xf32>
    %257 = vector.multi_reduction <add>, %256, %cst_90 [1] : vector<8x32xf32> to vector<8xf32>
    %258 = vector.shape_cast %257 : vector<8xf32> to vector<8x1xf32>
    %cst_91 = arith.constant 3.200000e+01 : f32
    %259 = vector.broadcast %cst_91 : f32 to vector<8x1xf32>
    %260 = arith.divf %258, %259 : vector<8x1xf32>
    %261 = vector.broadcast %253 : vector<8x1xf32> to vector<8x32xf32>
    %262 = arith.subf %247, %261 : vector<8x32xf32>
    %cst_92 = arith.constant 9.99999974E-6 : f32
    %263 = vector.broadcast %cst_92 : f32 to vector<8x1xf32>
    %264 = arith.addf %260, %263 : vector<8x1xf32>
    %265 = math.rsqrt %264 : vector<8x1xf32>
    %266 = vector.broadcast %265 : vector<8x1xf32> to vector<8x32xf32>
    %267 = arith.mulf %262, %266 : vector<8x32xf32>
    %268 = vector.broadcast %248 : vector<1x32xf32> to vector<8x32xf32>
    %269 = arith.mulf %267, %268 : vector<8x32xf32>
    %270 = vector.broadcast %249 : vector<1x32xf32> to vector<8x32xf32>
    %271 = arith.addf %269, %270 : vector<8x32xf32>
    %272 = vector.shape_cast %271 : vector<8x32xf32> to vector<4x2x32xf32>
    %c0_93 = arith.constant 0 : index
    %c0_94 = arith.constant 0 : index
    %c0_95 = arith.constant 0 : index
    %273 = vector.load %arg12[%c0_93, %c0_94, %c0_95] : memref<4x2x32xf32, #tpu.memory_space<vmem>>, vector<4x2x32xf32>
    tpu.vector_store %arg12[%c0_93, %c0_94, %c0_95], %272 {strides = array<i32>} : memref<4x2x32xf32, #tpu.memory_space<vmem>>, vector<4x2x32xf32>,
    %c0_96 = arith.constant 0 : index
    %c0_97 = arith.constant 0 : index
    %c0_98 = arith.constant 0 : index
    %274 = vector.load %arg17[%c0_96, %c0_97, %c0_98] : memref<4x2x32xf32, #tpu.memory_space<vmem>>, vector<1x2x32xf32>
    %275 = vector.shape_cast %274 : vector<1x2x32xf32> to vector<2x32xf32>
    %276 = vector.shape_cast %202 : vector<2x32xf32> to vector<1x2x32xf32>
    tpu.vector_store %arg17[%c0_96, %c0_97, %c0_98], %276 {strides = array<i32>} : memref<4x2x32xf32, #tpu.memory_space<vmem>>, vector<1x2x32xf32>,
    %c1_99 = arith.constant 1 : index
    %c0_100 = arith.constant 0 : index
    %c0_101 = arith.constant 0 : index
    %277 = vector.load %arg17[%c1_99, %c0_100, %c0_101] : memref<4x2x32xf32, #tpu.memory_space<vmem>>, vector<1x2x32xf32>
    %278 = vector.shape_cast %277 : vector<1x2x32xf32> to vector<2x32xf32>
    %279 = vector.shape_cast %204 : vector<2x32xf32> to vector<1x2x32xf32>
    tpu.vector_store %arg17[%c1_99, %c0_100, %c0_101], %279 {strides = array<i32>} : memref<4x2x32xf32, #tpu.memory_space<vmem>>, vector<1x2x32xf32>,
    %c2_102 = arith.constant 2 : index
    %c0_103 = arith.constant 0 : index
    %c0_104 = arith.constant 0 : index
    %280 = vector.load %arg17[%c2_102, %c0_103, %c0_104] : memref<4x2x32xf32, #tpu.memory_space<vmem>>, vector<1x2x32xf32>
    %281 = vector.shape_cast %280 : vector<1x2x32xf32> to vector<2x32xf32>
    %282 = vector.shape_cast %236 : vector<2x32xf32> to vector<1x2x32xf32>
    tpu.vector_store %arg17[%c2_102, %c0_103, %c0_104], %282 {strides = array<i32>} : memref<4x2x32xf32, #tpu.memory_space<vmem>>, vector<1x2x32xf32>,
    %c3_105 = arith.constant 3 : index
    %c0_106 = arith.constant 0 : index
    %c0_107 = arith.constant 0 : index
    %283 = vector.load %arg17[%c3_105, %c0_106, %c0_107] : memref<4x2x32xf32, #tpu.memory_space<vmem>>, vector<1x2x32xf32>
    %284 = vector.shape_cast %283 : vector<1x2x32xf32> to vector<2x32xf32>
    %285 = vector.shape_cast %234 : vector<2x32xf32> to vector<1x2x32xf32>
    tpu.vector_store %arg17[%c3_105, %c0_106, %c0_107], %285 {strides = array<i32>} : memref<4x2x32xf32, #tpu.memory_space<vmem>>, vector<1x2x32xf32>,
    %c0_108 = arith.constant 0 : index
    %c0_109 = arith.constant 0 : index
    %c0_110 = arith.constant 0 : index
    %286 = vector.load %arg13[%c0_108, %c0_109, %c0_110] : memref<2x2x32xf32, #tpu.memory_space<vmem>>, vector<1x2x32xf32>
    %287 = vector.shape_cast %286 : vector<1x2x32xf32> to vector<2x32xf32>
    %288 = vector.shape_cast %202 : vector<2x32xf32> to vector<1x2x32xf32>
    tpu.vector_store %arg13[%c0_108, %c0_109, %c0_110], %288 {strides = array<i32>} : memref<2x2x32xf32, #tpu.memory_space<vmem>>, vector<1x2x32xf32>,
    %c0_111 = arith.constant 0 : index
    %c0_112 = arith.constant 0 : index
    %c0_113 = arith.constant 0 : index
    %289 = vector.load %arg14[%c0_111, %c0_112, %c0_113] : memref<2x2x32xf32, #tpu.memory_space<vmem>>, vector<1x2x32xf32>
    %290 = vector.shape_cast %289 : vector<1x2x32xf32> to vector<2x32xf32>
    %291 = vector.shape_cast %204 : vector<2x32xf32> to vector<1x2x32xf32>
    tpu.vector_store %arg14[%c0_111, %c0_112, %c0_113], %291 {strides = array<i32>} : memref<2x2x32xf32, #tpu.memory_space<vmem>>, vector<1x2x32xf32>,
    %c1_114 = arith.constant 1 : index
    %c0_115 = arith.constant 0 : index
    %c0_116 = arith.constant 0 : index
    %292 = vector.load %arg13[%c1_114, %c0_115, %c0_116] : memref<2x2x32xf32, #tpu.memory_space<vmem>>, vector<1x2x32xf32>
    %293 = vector.shape_cast %292 : vector<1x2x32xf32> to vector<2x32xf32>
    %294 = vector.shape_cast %236 : vector<2x32xf32> to vector<1x2x32xf32>
    tpu.vector_store %arg13[%c1_114, %c0_115, %c0_116], %294 {strides = array<i32>} : memref<2x2x32xf32, #tpu.memory_space<vmem>>, vector<1x2x32xf32>,
    %c1_117 = arith.constant 1 : index
    %c0_118 = arith.constant 0 : index
    %c0_119 = arith.constant 0 : index
    %295 = vector.load %arg14[%c1_117, %c0_118, %c0_119] : memref<2x2x32xf32, #tpu.memory_space<vmem>>, vector<1x2x32xf32>
    %296 = vector.shape_cast %295 : vector<1x2x32xf32> to vector<2x32xf32>
    %297 = vector.shape_cast %234 : vector<2x32xf32> to vector<1x2x32xf32>
    tpu.vector_store %arg14[%c1_117, %c0_118, %c0_119], %297 {strides = array<i32>} : memref<2x2x32xf32, #tpu.memory_space<vmem>>, vector<1x2x32xf32>,
    return
  }
  func.func @transform_0(%arg0: i32) -> (i32, i32, i32) {
    %c0_i32 = arith.constant 0 : i32
    %c0_i32_0 = arith.constant 0 : i32
    %c0_i32_1 = arith.constant 0 : i32
    return %arg0, %c0_i32, %c0_i32_0 : i32, i32, i32
  }
  func.func @transform_1(%arg0: i32) -> (i32, i32) {
    %c0_i32 = arith.constant 0 : i32
    %c0_i32_0 = arith.constant 0 : i32
    %c0_i32_1 = arith.constant 0 : i32
    return %c0_i32, %c0_i32_0 : i32, i32
  }
  func.func @transform_2(%arg0: i32) -> (i32, i32) {
    %c0_i32 = arith.constant 0 : i32
    %c0_i32_0 = arith.constant 0 : i32
    %c0_i32_1 = arith.constant 0 : i32
    return %c0_i32, %c0_i32_0 : i32, i32
  }
  func.func @transform_3(%arg0: i32) -> (i32, i32) {
    %c0_i32 = arith.constant 0 : i32
    %c0_i32_0 = arith.constant 0 : i32
    %c0_i32_1 = arith.constant 0 : i32
    return %c0_i32, %c0_i32_0 : i32, i32
  }
  func.func @transform_4(%arg0: i32) -> (i32, i32) {
    %c0_i32 = arith.constant 0 : i32
    %c0_i32_0 = arith.constant 0 : i32
    %c0_i32_1 = arith.constant 0 : i32
    return %c0_i32, %c0_i32_0 : i32, i32
  }
  func.func @transform_5(%arg0: i32) -> (i32, i32) {
    %c0_i32 = arith.constant 0 : i32
    %c0_i32_0 = arith.constant 0 : i32
    %c0_i32_1 = arith.constant 0 : i32
    return %c0_i32, %c0_i32_0 : i32, i32
  }
  func.func @transform_6(%arg0: i32) -> (i32, i32) {
    %c0_i32 = arith.constant 0 : i32
    %c0_i32_0 = arith.constant 0 : i32
    %c0_i32_1 = arith.constant 0 : i32
    return %c0_i32, %c0_i32_0 : i32, i32
  }
  func.func @transform_7(%arg0: i32) -> (i32, i32) {
    %c0_i32 = arith.constant 0 : i32
    %c0_i32_0 = arith.constant 0 : i32
    %c0_i32_1 = arith.constant 0 : i32
    return %c0_i32, %c0_i32_0 : i32, i32
  }
  func.func @transform_8(%arg0: i32) -> (i32, i32) {
    %c0_i32 = arith.constant 0 : i32
    %c0_i32_0 = arith.constant 0 : i32
    %c0_i32_1 = arith.constant 0 : i32
    return %c0_i32, %c0_i32_0 : i32, i32
  }
  func.func @transform_9(%arg0: i32) -> (i32, i32) {
    %c0_i32 = arith.constant 0 : i32
    %c0_i32_0 = arith.constant 0 : i32
    %c0_i32_1 = arith.constant 0 : i32
    return %c0_i32, %c0_i32_0 : i32, i32
  }
  func.func @transform_10(%arg0: i32) -> (i32, i32) {
    %c0_i32 = arith.constant 0 : i32
    %c0_i32_0 = arith.constant 0 : i32
    %c0_i32_1 = arith.constant 0 : i32
    return %c0_i32, %c0_i32_0 : i32, i32
  }
  func.func @transform_11(%arg0: i32) -> (i32, i32, i32) {
    %c0_i32 = arith.constant 0 : i32
    %c0_i32_0 = arith.constant 0 : i32
    %c0_i32_1 = arith.constant 0 : i32
    return %arg0, %c0_i32, %c0_i32_0 : i32, i32, i32
  }
  func.func @transform_12(%arg0: i32) -> (i32, i32, i32) {
    %c0_i32 = arith.constant 0 : i32
    %c0_i32_0 = arith.constant 0 : i32
    %c0_i32_1 = arith.constant 0 : i32
    %c0_i32_2 = arith.constant 0 : i32
    return %c0_i32, %c0_i32_0, %c0_i32_1 : i32, i32, i32
  }
  func.func @transform_13(%arg0: i32) -> (i32, i32, i32) {
    %c0_i32 = arith.constant 0 : i32
    %c0_i32_0 = arith.constant 0 : i32
    %c0_i32_1 = arith.constant 0 : i32
    %c0_i32_2 = arith.constant 0 : i32
    return %c0_i32, %c0_i32_0, %c0_i32_1 : i32, i32, i32
  }
}

</mosaic_0001>

<llo_original>
// kernel: predictor_forward.1
$region0: #{predictor_forward.1}
  #allocation0 [shape = 'u32[]', space=smem, size = 0x4, offset = 0x4, fixed_abs, tag = 'smem constant byte address 0x4 - core index']
  #allocation1 [shape = 'u32[144,128]{1,0:T(1,128)}', space=vmem, size = 0x12000, scoped, tag = 'internal scratch']
  #allocation2 [shape = 'f32[4,2,128]{2,1,0:T(2,128)}', space=vmem, size = 0x1000, scoped, tag = 'scratch operand']
  #allocation3 [shape = 'f32[4,2,32]{2,1,0:T(2,128)}', space=vmem, size = 0x1000, scoped, tag = 'scratch operand']
  #allocation4 [shape = 'f32[4,2,32]{2,1,0:T(2,128)}', space=vmem, size = 0x1000, scoped, tag = 'scratch operand']
  %s0 = inlined_call_operand.vmem [shape: f32[8,2,32], index: 0, kind: input, shape index: {}]
  %s1 = inlined_call_operand.vmem [shape: f32[1,32], index: 1, kind: input, shape index: {}]
  %s2 = inlined_call_operand.vmem [shape: f32[1,32], index: 2, kind: input, shape index: {}]
  %s3 = inlined_call_operand.vmem [shape: bf16[32,128], index: 3, kind: input, shape index: {}]
  %s4 = inlined_call_operand.vmem [shape: bf16[64,256], index: 4, kind: input, shape index: {}]
  %s5 = inlined_call_operand.vmem [shape: f32[1,128], index: 5, kind: input, shape index: {}]
  %s6 = inlined_call_operand.vmem [shape: f32[1,128], index: 6, kind: input, shape index: {}]
  %s7 = inlined_call_operand.vmem [shape: bf16[32,32], index: 7, kind: input, shape index: {}]
  %s8 = inlined_call_operand.vmem [shape: f32[1,32], index: 8, kind: input, shape index: {}]
  %s9 = inlined_call_operand.vmem [shape: f32[1,32], index: 9, kind: input, shape index: {}]
  %s10 = inlined_call_operand.vmem [shape: f32[1,32], index: 10, kind: input, shape index: {}]
  %s11 = inlined_call_operand.vmem [shape: f32[8,2,32], index: 11, kind: output, shape index: {0}]
  %s12 = inlined_call_operand.vmem [shape: f32[2,2,32], index: 12, kind: output, shape index: {1}]
  %s13 = inlined_call_operand.vmem [shape: f32[2,2,32], index: 13, kind: output, shape index: {2}]
  %14 = xla_tuple %s11, %s12, %s13
  %s15 = sld [smem:[#allocation0]]
  $region97: #{predictor_forward.1} parent=0
    _
  %s17 = ssub.s32 1, %s15
  %s18 = scalar_select 0, %s17, %s15
  loop: start=0, step=1, limit=4
  $region2: #{predictor_forward.1} parent=0 // loop_pre_header
    _
  $region3: #{predictor_forward.1} parent=0 // loop_header
    %s20 = sphi 0, %s24
    %p21 = scmp.ge.s32.totalorder %s20, 4
    %s30 = sphi 0, %s32
    %s33 = sphi 0, %s30
    %s34 = sphi 0, %s33
    %s50 = sphi 0, %s34
    %s54 = sphi 0, %s54
    %s56 = sphi 0, %s54
    %s57 = sphi 0, %s56
    %s71 = sphi 0, %s57
    %s75 = sphi 0, %s75
    %s77 = sphi 0, %s75
    %s78 = sphi 0, %s77
    %s92 = sphi 0, %s78
    %s96 = sphi 0, %s96
    %s98 = sphi 0, %s96
    %s99 = sphi 0, %s98
    %s113 = sphi 0, %s99
    %s117 = sphi 0, %s117
    %s119 = sphi 0, %s117
    %s120 = sphi 0, %s119
    %s134 = sphi 0, %s120
    %s138 = sphi 0, %s138
    %s140 = sphi 0, %s138
    %s141 = sphi 0, %s140
    %s155 = sphi 0, %s141
    %s159 = sphi 0, %s159
    %s161 = sphi 0, %s159
    %s162 = sphi 0, %s161
    %s176 = sphi 0, %s162
    %s180 = sphi 0, %s180
    %s182 = sphi 0, %s180
    %s183 = sphi 0, %s182
    %s197 = sphi 0, %s183
    %s201 = sphi 0, %s201
    %s203 = sphi 0, %s201
    %s204 = sphi 0, %s203
    %s218 = sphi 0, %s204
    %s222 = sphi 0, %s222
    %s224 = sphi 0, %s222
    %s225 = sphi 0, %s224
    %s239 = sphi 0, %s225
    %s243 = sphi 0, %s243
    %s245 = sphi 0, %s243
    %s246 = sphi 0, %s245
    %s260 = sphi 0, %s246
    %s266 = sphi 0, %s268
    %s269 = sphi 0, %s266
    %s270 = sphi 0, %s269
    %s286 = sphi 0, %s270
    %s290 = sphi 0, %s290
    %s292 = sphi 0, %s290
    %s293 = sphi 0, %s292
    %s307 = sphi 0, %s293
    %s311 = sphi 0, %s311
    %s313 = sphi 0, %s311
    %s314 = sphi 0, %s313
    %s328 = sphi 0, %s314
  $region4: #{predictor_forward.1} parent=0 // loop_header_branch
    %23 = sbr.rel (%p21) target = $region8
  $region5: #{predictor_forward.1} parent=0 // loop_body
    %s25 = ssub.s32 %s20, 1
    %s26 = ssub.s32 %s20, 2
    %s27 = sadd.s32 %s20, 1
    %s28 = ssub.s32 %s20, %s27
    %p29 = scmp.eq.s32.totalorder %s28, 0
    %s31 = sadd.s32 %s30, 1
    %s32 = scalar_select %p29, %s30, %s31
    %p35 = pneg %p29
    %p36 = scmp.eq.s32.totalorder %s20, 1
    %p37 = por %p35, %p36
    %p38 = scmp.ne.s32.totalorder %s30, %s33
    %p39 = scmp.eq.s32.totalorder %s20, 0
    %p40 = por %p38, %p39
    %p41 = scmp.ne.s32.totalorder %s30, %s33
    %p42 = scmp.eq.s32.totalorder %s25, 1
    %p43 = por %p41, %p42
    %p44 = scmp.ne.s32.totalorder %s33, %s34
    %p45 = scmp.eq.s32.totalorder %s25, 0
    %p46 = por %p44, %p45
    %p47 = scmp.ne.s32.totalorder %s33, %s34
    %p48 = scmp.eq.s32.totalorder %s26, 1
    %p49 = por %p47, %p48
    %p51 = scmp.ne.s32.totalorder %s34, %s50
    %p52 = scmp.eq.s32.totalorder %s26, 0
    %p53 = por %p51, %p52
    %s55 = sadd.s32 %s54, 1
    %p58 = scmp.eq.s32.totalorder %s20, 1
    %p59 = scmp.ne.s32.totalorder %s54, %s56
    %p60 = scmp.eq.s32.totalorder %s20, 0
    %p61 = por %p59, %p60
    %p62 = scmp.ne.s32.totalorder %s54, %s56
    %p63 = scmp.eq.s32.totalorder %s25, 1
    %p64 = por %p62, %p63
    %p65 = scmp.ne.s32.totalorder %s56, %s57
    %p66 = scmp.eq.s32.totalorder %s25, 0
    %p67 = por %p65, %p66
    %p68 = scmp.ne.s32.totalorder %s56, %s57
    %p69 = scmp.eq.s32.totalorder %s26, 1
    %p70 = por %p68, %p69
    %p72 = scmp.ne.s32.totalorder %s57, %s71
    %p73 = scmp.eq.s32.totalorder %s26, 0
    %p74 = por %p72, %p73
    %s76 = sadd.s32 %s75, 1
    %p79 = scmp.eq.s32.totalorder %s20, 1
    %p80 = scmp.ne.s32.totalorder %s75, %s77
    %p81 = scmp.eq.s32.totalorder %s20, 0
    %p82 = por %p80, %p81
    %p83 = scmp.ne.s32.totalorder %s75, %s77
    %p84 = scmp.eq.s32.totalorder %s25, 1
    %p85 = por %p83, %p84
    %p86 = scmp.ne.s32.totalorder %s77, %s78
    %p87 = scmp.eq.s32.totalorder %s25, 0
    %p88 = por %p86, %p87
    %p89 = scmp.ne.s32.totalorder %s77, %s78
    %p90 = scmp.eq.s32.totalorder %s26, 1
    %p91 = por %p89, %p90
    %p93 = scmp.ne.s32.totalorder %s78, %s92
    %p94 = scmp.eq.s32.totalorder %s26, 0
    %p95 = por %p93, %p94
    %s97 = sadd.s32 %s96, 1
    %p100 = scmp.eq.s32.totalorder %s20, 1
    %p101 = scmp.ne.s32.totalorder %s96, %s98
    %p102 = scmp.eq.s32.totalorder %s20, 0
    %p103 = por %p101, %p102
    %p104 = scmp.ne.s32.totalorder %s96, %s98
    %p105 = scmp.eq.s32.totalorder %s25, 1
    %p106 = por %p104, %p105
    %p107 = scmp.ne.s32.totalorder %s98, %s99
    %p108 = scmp.eq.s32.totalorder %s25, 0
    %p109 = por %p107, %p108
    %p110 = scmp.ne.s32.totalorder %s98, %s99
    %p111 = scmp.eq.s32.totalorder %s26, 1
    %p112 = por %p110, %p111
    %p114 = scmp.ne.s32.totalorder %s99, %s113
    %p115 = scmp.eq.s32.totalorder %s26, 0
    %p116 = por %p114, %p115
    %s118 = sadd.s32 %s117, 1
    %p121 = scmp.eq.s32.totalorder %s20, 1
    %p122 = scmp.ne.s32.totalorder %s117, %s119
    %p123 = scmp.eq.s32.totalorder %s20, 0
    %p124 = por %p122, %p123
    %p125 = scmp.ne.s32.totalorder %s117, %s119
    %p126 = scmp.eq.s32.totalorder %s25, 1
    %p127 = por %p125, %p126
    %p128 = scmp.ne.s32.totalorder %s119, %s120
    %p129 = scmp.eq.s32.totalorder %s25, 0
    %p130 = por %p128, %p129
    %p131 = scmp.ne.s32.totalorder %s119, %s120
    %p132 = scmp.eq.s32.totalorder %s26, 1
    %p133 = por %p131, %p132
    %p135 = scmp.ne.s32.totalorder %s120, %s134
    %p136 = scmp.eq.s32.totalorder %s26, 0
    %p137 = por %p135, %p136
    %s139 = sadd.s32 %s138, 1
    %p142 = scmp.eq.s32.totalorder %s20, 1
    %p143 = scmp.ne.s32.totalorder %s138, %s140
    %p144 = scmp.eq.s32.totalorder %s20, 0
    %p145 = por %p143, %p144
    %p146 = scmp.ne.s32.totalorder %s138, %s140
    %p147 = scmp.eq.s32.totalorder %s25, 1
    %p148 = por %p146, %p147
    %p149 = scmp.ne.s32.totalorder %s140, %s141
    %p150 = scmp.eq.s32.totalorder %s25, 0
    %p151 = por %p149, %p150
    %p152 = scmp.ne.s32.totalorder %s140, %s141
    %p153 = scmp.eq.s32.totalorder %s26, 1
    %p154 = por %p152, %p153
    %p156 = scmp.ne.s32.totalorder %s141, %s155
    %p157 = scmp.eq.s32.totalorder %s26, 0
    %p158 = por %p156, %p157
    %s160 = sadd.s32 %s159, 1
    %p163 = scmp.eq.s32.totalorder %s20, 1
    %p164 = scmp.ne.s32.totalorder %s159, %s161
    %p165 = scmp.eq.s32.totalorder %s20, 0
    %p166 = por %p164, %p165
    %p167 = scmp.ne.s32.totalorder %s159, %s161
    %p168 = scmp.eq.s32.totalorder %s25, 1
    %p169 = por %p167, %p168
    %p170 = scmp.ne.s32.totalorder %s161, %s162
    %p171 = scmp.eq.s32.totalorder %s25, 0
    %p172 = por %p170, %p171
    %p173 = scmp.ne.s32.totalorder %s161, %s162
    %p174 = scmp.eq.s32.totalorder %s26, 1
    %p175 = por %p173, %p174
    %p177 = scmp.ne.s32.totalorder %s162, %s176
    %p178 = scmp.eq.s32.totalorder %s26, 0
    %p179 = por %p177, %p178
    %s181 = sadd.s32 %s180, 1
    %p184 = scmp.eq.s32.totalorder %s20, 1
    %p185 = scmp.ne.s32.totalorder %s180, %s182
    %p186 = scmp.eq.s32.totalorder %s20, 0
    %p187 = por %p185, %p186
    %p188 = scmp.ne.s32.totalorder %s180, %s182
    %p189 = scmp.eq.s32.totalorder %s25, 1
    %p190 = por %p188, %p189
    %p191 = scmp.ne.s32.totalorder %s182, %s183
    %p192 = scmp.eq.s32.totalorder %s25, 0
    %p193 = por %p191, %p192
    %p194 = scmp.ne.s32.totalorder %s182, %s183
    %p195 = scmp.eq.s32.totalorder %s26, 1
    %p196 = por %p194, %p195
    %p198 = scmp.ne.s32.totalorder %s183, %s197
    %p199 = scmp.eq.s32.totalorder %s26, 0
    %p200 = por %p198, %p199
    %s202 = sadd.s32 %s201, 1
    %p205 = scmp.eq.s32.totalorder %s20, 1
    %p206 = scmp.ne.s32.totalorder %s201, %s203
    %p207 = scmp.eq.s32.totalorder %s20, 0
    %p208 = por %p206, %p207
    %p209 = scmp.ne.s32.totalorder %s201, %s203
    %p210 = scmp.eq.s32.totalorder %s25, 1
    %p211 = por %p209, %p210
    %p212 = scmp.ne.s32.totalorder %s203, %s204
    %p213 = scmp.eq.s32.totalorder %s25, 0
    %p214 = por %p212, %p213
    %p215 = scmp.ne.s32.totalorder %s203, %s204
    %p216 = scmp.eq.s32.totalorder %s26, 1
    %p217 = por %p215, %p216
    %p219 = scmp.ne.s32.totalorder %s204, %s218
    %p220 = scmp.eq.s32.totalorder %s26, 0
    %p221 = por %p219, %p220
    %s223 = sadd.s32 %s222, 1
    %p226 = scmp.eq.s32.totalorder %s20, 1
    %p227 = scmp.ne.s32.totalorder %s222, %s224
    %p228 = scmp.eq.s32.totalorder %s20, 0
    %p229 = por %p227, %p228
    %p230 = scmp.ne.s32.totalorder %s222, %s224
    %p231 = scmp.eq.s32.totalorder %s25, 1
    %p232 = por %p230, %p231
    %p233 = scmp.ne.s32.totalorder %s224, %s225
    %p234 = scmp.eq.s32.totalorder %s25, 0
    %p235 = por %p233, %p234
    %p236 = scmp.ne.s32.totalorder %s224, %s225
    %p237 = scmp.eq.s32.totalorder %s26, 1
    %p238 = por %p236, %p237
    %p240 = scmp.ne.s32.totalorder %s225, %s239
    %p241 = scmp.eq.s32.totalorder %s26, 0
    %p242 = por %p240, %p241
    %s244 = sadd.s32 %s243, 1
    %p247 = scmp.eq.s32.totalorder %s20, 1
    %p248 = scmp.ne.s32.totalorder %s243, %s245
    %p249 = scmp.eq.s32.totalorder %s20, 0
    %p250 = por %p248, %p249
    %p251 = scmp.ne.s32.totalorder %s243, %s245
    %p252 = scmp.eq.s32.totalorder %s25, 1
    %p253 = por %p251, %p252
    %p254 = scmp.ne.s32.totalorder %s245, %s246
    %p255 = scmp.eq.s32.totalorder %s25, 0
    %p256 = por %p254, %p255
    %p257 = scmp.ne.s32.totalorder %s245, %s246
    %p258 = scmp.eq.s32.totalorder %s26, 1
    %p259 = por %p257, %p258
    %p261 = scmp.ne.s32.totalorder %s246, %s260
    %p262 = scmp.eq.s32.totalorder %s26, 0
    %p263 = por %p261, %p262
    %s264 = ssub.s32 %s20, %s27
    %p265 = scmp.eq.s32.totalorder %s264, 0
    %s267 = sadd.s32 %s266, 1
    %s268 = scalar_select %p265, %s266, %s267
    %p271 = pneg %p265
    %p272 = scmp.eq.s32.totalorder %s20, 1
    %p273 = por %p271, %p272
    %p274 = scmp.ne.s32.totalorder %s266, %s269
    %p275 = scmp.eq.s32.totalorder %s20, 0
    %p276 = por %p274, %p275
    %p277 = scmp.ne.s32.totalorder %s266, %s269
    %p278 = scmp.eq.s32.totalorder %s25, 1
    %p279 = por %p277, %p278
    %p280 = scmp.ne.s32.totalorder %s269, %s270
    %p281 = scmp.eq.s32.totalorder %s25, 0
    %p282 = por %p280, %p281
    %p283 = scmp.ne.s32.totalorder %s269, %s270
    %p284 = scmp.eq.s32.totalorder %s26, 1
    %p285 = por %p283, %p284
    %p287 = scmp.ne.s32.totalorder %s270, %s286
    %p288 = scmp.eq.s32.totalorder %s26, 0
    %p289 = por %p287, %p288
    %s291 = sadd.s32 %s290, 1
    %p294 = scmp.eq.s32.totalorder %s20, 1
    %p295 = scmp.ne.s32.totalorder %s290, %s292
    %p296 = scmp.eq.s32.totalorder %s20, 0
    %p297 = por %p295, %p296
    %p298 = scmp.ne.s32.totalorder %s290, %s292
    %p299 = scmp.eq.s32.totalorder %s25, 1
    %p300 = por %p298, %p299
    %p301 = scmp.ne.s32.totalorder %s292, %s293
    %p302 = scmp.eq.s32.totalorder %s25, 0
    %p303 = por %p301, %p302
    %p304 = scmp.ne.s32.totalorder %s292, %s293
    %p305 = scmp.eq.s32.totalorder %s26, 1
    %p306 = por %p304, %p305
    %p308 = scmp.ne.s32.totalorder %s293, %s307
    %p309 = scmp.eq.s32.totalorder %s26, 0
    %p310 = por %p308, %p309
    %s312 = sadd.s32 %s311, 1
    %p315 = scmp.eq.s32.totalorder %s20, 1
    %p316 = scmp.ne.s32.totalorder %s311, %s313
    %p317 = scmp.eq.s32.totalorder %s20, 0
    %p318 = por %p316, %p317
    %p319 = scmp.ne.s32.totalorder %s311, %s313
    %p320 = scmp.eq.s32.totalorder %s25, 1
    %p321 = por %p319, %p320
    %p322 = scmp.ne.s32.totalorder %s313, %s314
    %p323 = scmp.eq.s32.totalorder %s25, 0
    %p324 = por %p322, %p323
    %p325 = scmp.ne.s32.totalorder %s313, %s314
    %p326 = scmp.eq.s32.totalorder %s26, 1
    %p327 = por %p325, %p326
    %p329 = scmp.ne.s32.totalorder %s314, %s328
    %p330 = scmp.eq.s32.totalorder %s26, 0
    %p331 = por %p329, %p330
    %p332 = scmp.le.s32.totalorder 1, %s20
    %p333 = scmp.lt.s32.totalorder %s20, 3
    %p334 = pnand %p332, %p333
    %p335 = pneg %p334
    // Predicated region
    $region9: #{predictor_forward.1} parent=5 // pred_check
      _
    $region10: #{predictor_forward.1} parent=5 // pred_check_branch
      %337 = sbr.rel (%p334) target = $region12
    $region11: #{predictor_forward.1} parent=5 // pred_region
      %s338 = ssub.s32 %s20, 1
      // Predicated region
      $region13: #{predictor_forward.1} parent=11 // pred_check
        %p339 = pneg %p67
      $region14: #{predictor_forward.1} parent=11 // pred_check_branch
        %341 = sbr.rel (%p339) target = $region16
      $region15: #{predictor_forward.1} parent=11 // pred_region
        _
      $region16: #{predictor_forward.1} parent=11 // pred_fallthru
        _
      // Predicated region
      $region17: #{predictor_forward.1} parent=11 // pred_check
        %p342 = pneg %p88
      $region18: #{predictor_forward.1} parent=11 // pred_check_branch
        %344 = sbr.rel (%p342) target = $region20
      $region19: #{predictor_forward.1} parent=11 // pred_region
        _
      $region20: #{predictor_forward.1} parent=11 // pred_fallthru
        _
      // Predicated region
      $region21: #{predictor_forward.1} parent=11 // pred_check
        %p345 = pneg %p109
      $region22: #{predictor_forward.1} parent=11 // pred_check_branch
        %347 = sbr.rel (%p345) target = $region24
      $region23: #{predictor_forward.1} parent=11 // pred_region
        _
      $region24: #{predictor_forward.1} parent=11 // pred_fallthru
        _
      // Predicated region
      $region25: #{predictor_forward.1} parent=11 // pred_check
        %p348 = pneg %p130
      $region26: #{predictor_forward.1} parent=11 // pred_check_branch
        %350 = sbr.rel (%p348) target = $region28
      $region27: #{predictor_forward.1} parent=11 // pred_region
        _
      $region28: #{predictor_forward.1} parent=11 // pred_fallthru
        _
      // Predicated region
      $region29: #{predictor_forward.1} parent=11 // pred_check
        %p351 = pneg %p151
      $region30: #{predictor_forward.1} parent=11 // pred_check_branch
        %353 = sbr.rel (%p351) target = $region32
      $region31: #{predictor_forward.1} parent=11 // pred_region
        _
      $region32: #{predictor_forward.1} parent=11 // pred_fallthru
        _
      // Predicated region
      $region33: #{predictor_forward.1} parent=11 // pred_check
        %p354 = pneg %p172
      $region34: #{predictor_forward.1} parent=11 // pred_check_branch
        %356 = sbr.rel (%p354) target = $region36
      $region35: #{predictor_forward.1} parent=11 // pred_region
        _
      $region36: #{predictor_forward.1} parent=11 // pred_fallthru
        _
      // Predicated region
      $region37: #{predictor_forward.1} parent=11 // pred_check
        %p357 = pneg %p193
      $region38: #{predictor_forward.1} parent=11 // pred_check_branch
        %359 = sbr.rel (%p357) target = $region40
      $region39: #{predictor_forward.1} parent=11 // pred_region
        _
      $region40: #{predictor_forward.1} parent=11 // pred_fallthru
        _
      // Predicated region
      $region41: #{predictor_forward.1} parent=11 // pred_check
        %p360 = pneg %p214
      $region42: #{predictor_forward.1} parent=11 // pred_check_branch
        %362 = sbr.rel (%p360) target = $region44
      $region43: #{predictor_forward.1} parent=11 // pred_region
        _
      $region44: #{predictor_forward.1} parent=11 // pred_fallthru
        _
      // Predicated region
      $region45: #{predictor_forward.1} parent=11 // pred_check
        %p363 = pneg %p235
      $region46: #{predictor_forward.1} parent=11 // pred_check_branch
        %365 = sbr.rel (%p363) target = $region48
      $region47: #{predictor_forward.1} parent=11 // pred_region
        _
      $region48: #{predictor_forward.1} parent=11 // pred_fallthru
        _
      // Predicated region
      $region49: #{predictor_forward.1} parent=11 // pred_check
        %p366 = pneg %p256
      $region50: #{predictor_forward.1} parent=11 // pred_check_branch
        %368 = sbr.rel (%p366) target = $region52
      $region51: #{predictor_forward.1} parent=11 // pred_region
        _
      $region52: #{predictor_forward.1} parent=11 // pred_fallthru
        _
    $region12: #{predictor_forward.1} parent=5 // pred_fallthru
      _
    %p369 = scmp.lt.s32.totalorder %s20, 2
    // Predicated region
    $region53: #{predictor_forward.1} parent=5 // pred_check
      %p370 = pneg %p369
    $region54: #{predictor_forward.1} parent=5 // pred_check_branch
      %372 = sbr.rel (%p370) target = $region56
    $region55: #{predictor_forward.1} parent=5 // pred_region
      // Predicated region
      $region57: #{predictor_forward.1} parent=55 // pred_check
        %p373 = pneg %p40
      $region58: #{predictor_forward.1} parent=55 // pred_check_branch
        %375 = sbr.rel (%p373) target = $region60
      $region59: #{predictor_forward.1} parent=55 // pred_region
        %s376 = smul.u32 4, %s20
        %p377 = scmp.lt.s32.totalorder %s376, 7
        %s378 = scalar_select %p377, %s376, 7
        %s379 = smul.addr %s378, 2
        %s380 = scalar_lea.vmem %s0, %s379
        %s381 = smul.u32 4, %s20
      $region60: #{predictor_forward.1} parent=55 // pred_fallthru
        _
    $region56: #{predictor_forward.1} parent=5 // pred_fallthru
      _
    %p382 = scmp.le.s32.totalorder 1, %s20
    %p383 = scmp.lt.s32.totalorder %s20, 3
    %p384 = pnand %p382, %p383
    %p385 = pneg %p384
    // Predicated region
    $region61: #{predictor_forward.1} parent=5 // pred_check
      _
    $region62: #{predictor_forward.1} parent=5 // pred_check_branch
      %387 = sbr.rel (%p384) target = $region64
    $region63: #{predictor_forward.1} parent=5 // pred_region
      %s388 = ssub.s32 %s20, 1
      %s389 = smul.u32 4, %s25
      %p390 = scmp.lt.s32.totalorder %s389, 7
      %s391 = scalar_select %p390, %s389, 7
      %s392 = smul.addr %s391, 2
      %s393 = scalar_lea.vmem %s0, %s392
      %p394 = pneg %p46
      %p395 = pneg %p43
      %p396 = pneg %p67
      %p397 = pneg %p64
      %p398 = pneg %p88
      %p399 = pneg %p85
      %p400 = pneg %p109
      %p401 = pneg %p106
      %p402 = pneg %p130
      %p403 = pneg %p127
      %p404 = pneg %p151
      %p405 = pneg %p148
      %p406 = pneg %p172
      %p407 = pneg %p169
      %p408 = pneg %p193
      %p409 = pneg %p190
      %p410 = pneg %p214
      %p411 = pneg %p211
      %p412 = pneg %p235
      %p413 = pneg %p232
      %p414 = pneg %p256
      %p415 = pneg %p253
      %p416 = pneg %p282
      %p417 = pneg %p279
      %s418 = smul.u32 4, %s25
      %p419 = scmp.lt.s32.totalorder %s418, 7
      %s420 = scalar_select %p419, %s418, 7
      %s421 = smul.addr %s420, 2
      %s422 = scalar_lea.vmem %s11, %s421
      %p423 = pneg %p303
      %p424 = pneg %p300
      %p425 = pneg %p324
      %p426 = pneg %p321
      %s427 = smul.u32 4, %s25
      %p428 = scmp.lt.s32.totalorder %s427, 7
      %s429 = scalar_select %p428, %s427, 7
      %s430 = smul.addr %s429, 2
      %s431 = scalar_lea.vmem %s0, %s430
      %s432 = smul.u32 4, %s25
      %s433 = smul.u32 4, %s25
      %p434 = scmp.lt.s32.totalorder %s433, 7
      %s435 = scalar_select %p434, %s433, 7
      %s436 = smul.addr %s435, 2
      %s437 = scalar_lea.vmem %s11, %s436
      %s438 = smul.u32 4, %s25
      %p440 = scmp.eq.s32.totalorder %s25, 0
      // Predicated region
      $region65: #{predictor_forward.1} parent=63 // pred_check
        %p441 = pneg %p440
      $region66: #{predictor_forward.1} parent=63 // pred_check_branch
        %443 = sbr.rel (%p441) target = $region68
      $region67: #{predictor_forward.1} parent=63 // pred_region
        %vm444 = vcmask 254976
        %445 = vst.msk [vmem:[#allocation4] sm:$0x3] %vm444, 0.0
        %446 = vst.msk [vmem:[#allocation4 + $0x2] sm:$0x3] %vm444, 0.0
        %447 = vst.msk [vmem:[#allocation4 + $0x4] sm:$0x3] %vm444, 0.0
        %448 = vst.msk [vmem:[#allocation4 + $0x6] sm:$0x3] %vm444, 0.0
      $region68: #{predictor_forward.1} parent=63 // pred_fallthru
        _
      %v449 = vld [vmem:[%s431] sm:$0x3]
      %v450 = vld [vmem:[%s431 + $0x2] sm:$0x3]
      %v451 = vld [vmem:[%s431 + $0x4] sm:$0x3]
      %v452 = vld [vmem:[%s431 + $0x6] sm:$0x3]
      %v453 = vld [vmem:[%s1] sm:$0x1]
      %v454 = vld [vmem:[%s2] sm:$0x1]
      %vm455 = vcmask 254976
      %v456 = vsel %vm455, %v449, 0.0
      %457 = vadd.xlane.f32.xlu0 %v456
      %v458 = vpop.xlane.xlu0 %457
      %v459 = vsel %vm455, %v450, 0.0
      %460 = vadd.xlane.f32.xlu0 %v459
      %v461 = vpop.xlane.xlu0 %460
      %v462 = vsel %vm455, %v451, 0.0
      %463 = vadd.xlane.f32.xlu0 %v462
      %v464 = vpop.xlane.xlu0 %463
      %v465 = vsel %vm455, %v452, 0.0
      %466 = vadd.xlane.f32.xlu0 %v465
      %v467 = vpop.xlane.xlu0 %466
      %v468 = vrcp.pop 32.0
      %v469 = vmul.f32 %v458, %v468
      %v470 = vmul.f32 %v461, %v468
      %v471 = vmul.f32 %v464, %v468
      %v472 = vmul.f32 %v467, %v468
      %v473 = vsub.f32 %v449, %v469
      %v474 = vsub.f32 %v450, %v470
      %v475 = vsub.f32 %v451, %v471
      %v476 = vsub.f32 %v452, %v472
      %v477 = vmul.f32 %v473, %v473
      %v478 = vmul.f32 %v474, %v474
      %v479 = vmul.f32 %v475, %v475
      %v480 = vmul.f32 %v476, %v476
      %v481 = vsel %vm455, %v477, 0.0
      %482 = vadd.xlane.f32.xlu0 %v481
      %v483 = vpop.xlane.xlu0 %482
      %v484 = vsel %vm455, %v478, 0.0
      %485 = vadd.xlane.f32.xlu0 %v484
      %v486 = vpop.xlane.xlu0 %485
      %v487 = vsel %vm455, %v479, 0.0
      %488 = vadd.xlane.f32.xlu0 %v487
      %v489 = vpop.xlane.xlu0 %488
      %v490 = vsel %vm455, %v480, 0.0
      %491 = vadd.xlane.f32.xlu0 %v490
      %v492 = vpop.xlane.xlu0 %491
      %v493 = vmul.f32 %v483, %v468
      %v494 = vmul.f32 %v486, %v468
      %v495 = vmul.f32 %v489, %v468
      %v496 = vmul.f32 %v492, %v468
      %v497 = vadd.f32 %v493, 1e-05
      %v498 = vadd.f32 %v494, 1e-05
      %v499 = vadd.f32 %v495, 1e-05
      %v500 = vadd.f32 %v496, 1e-05
      %v501 = vrsqrt.pop %v497
      %v502 = vrsqrt.pop %v498
      %v503 = vrsqrt.pop %v499
      %v504 = vrsqrt.pop %v500
      %v505 = vmul.f32 %v473, %v501
      %v506 = vmul.f32 %v474, %v502
      %v507 = vmul.f32 %v475, %v503
      %v508 = vmul.f32 %v476, %v504
      %v510 = vlaneseq
      %v511 = vshrl.u32 %v510, 7
      %v512 = vsub.s32 0, %v511
      %v513 = vrot.slane %v453, %v512
      %v515 = vmul.f32 %v505, %v513
      %v516 = vmul.f32 %v506, %v513
      %v517 = vmul.f32 %v507, %v513
      %v518 = vmul.f32 %v508, %v513
      %v520 = vlaneseq
      %v521 = vshrl.u32 %v520, 7
      %v522 = vsub.s32 0, %v521
      %v523 = vrot.slane %v454, %v522
      %v525 = vadd.f32 %v515, %v523
      %v526 = vadd.f32 %v516, %v523
      %v527 = vadd.f32 %v517, %v523
      %v528 = vadd.f32 %v518, %v523
      %v529 = vld [vmem:[%s3] sm:$0xf]
      %v530 = vld [vmem:[%s3 + $0x4] sm:$0xf]
      %v531 = vld [vmem:[%s3 + $0x8] sm:$0xf]
      %v532 = vld [vmem:[%s3 + $0xc] sm:$0xf]
      %v537 = vcombine.low %v525, %v526
      %v538 = vcombine.low %v527, %v528
      %v540 = vunpack.c.l.s4 1983009808
      %v541 = vunpack.c.0.s8 %v540
      %v542 = vlaneseq
      %v543 = vshrl.u32 %v542, 7
      %v544 = vsub.s32 %v541, %v543
      %v545 = vrot.slane %v537, %v544
      %v547 = vunpack.c.l.s4 1983009808
      %v548 = vunpack.c.0.s8 %v547
      %v549 = vlaneseq
      %v550 = vshrl.u32 %v549, 7
      %v551 = vsub.s32 %v548, %v550
      %v552 = vrot.slane %v538, %v551
      %v553 = vcombine.low %v545, %v552
      %v555 = vpack.c.bf16 %v553, %v553
      %v556 = vld [vmem:[%s5] sm:$0x1]
      %v558 = vlaneseq
      %v559 = vshrl.u32 %v558, 7
      %v560 = vsub.s32 0, %v559
      %v561 = vrot.slane %v556, %v560
      %v567 = vunpack.c.l.b16 %v529
      %v568 = vunpack.c.l.b16 %v530
      %v569 = vunpack.c.l.b16 %v531
      %v570 = vunpack.c.l.b16 %v532
      %v571 = vpack.c.b16 %v568, %v567
      %v572 = vpack.c.b16 %v570, %v569
      %vm575 = vcmask 261120
      %v577 = vsel %vm575, %v555, 0
      %579 = vmatprep.subr.bf16.mxu0 0
      %580 = vmatpush1.bf16.msra.mxu0 %v571
      %581 = vmatprep.subr.bf16.mxu0 0
      %582 = vmatpush1.bf16.msra.mxu0 %v572
      %583 = vmatprep.subr.bf16.mxu0 0
      %584 = vmatpush1.bf16.msra.mxu0 0
      %585 = vmatprep.subr.bf16.mxu0 0
      %586 = vmatpush1.bf16.msra.mxu0 0
      %587 = vmatprep.subr.bf16.mxu0 0
      %588 = vmatpush1.bf16.msra.mxu0 0
      %589 = vmatprep.subr.bf16.mxu0 0
      %590 = vmatpush1.bf16.msra.mxu0 0
      %591 = vmatprep.subr.bf16.mxu0 0
      %592 = vmatpush1.bf16.msra.mxu0 0
      %593 = vmatprep.subr.bf16.mxu0 0
      %594 = vmatpush1.bf16.msra.mxu0 0
      %595 = vmatprep.subr.bf16.mxu0 0
      %596 = vmatpush1.bf16.msra.mxu0 0
      %597 = vmatprep.subr.bf16.mxu0 0
      %598 = vmatpush1.bf16.msra.mxu0 0
      %599 = vmatprep.subr.bf16.mxu0 0
      %600 = vmatpush1.bf16.msra.mxu0 0
      %601 = vmatprep.subr.bf16.mxu0 0
      %602 = vmatpush1.bf16.msra.mxu0 0
      %603 = vmatprep.subr.bf16.mxu0 0
      %604 = vmatpush1.bf16.msra.mxu0 0
      %605 = vmatprep.subr.bf16.mxu0 0
      %606 = vmatpush1.bf16.msra.mxu0 0
      %607 = vmatprep.subr.bf16.mxu0 0
      %608 = vmatpush1.bf16.msra.mxu0 0
      %609 = vmatprep.subr.bf16.mxu0 0
      %610 = vmatpush1.bf16.msra.mxu0 0
      %611 = vmatprep.mubr.bf16.mxu0 0
      %612 = vmatmul.mubr.bf16.gmra.mrb[0].mxu0 %v577
      %v613 = vpop.f32.mrb[0].mxu0
      %v614 = vadd.f32 %v561, %v613
      %v615 = vpop.f32.mrb[0].mxu0
      %v616 = vpop.f32.mrb[0].mxu0
      %v617 = vpop.f32.mrb[0].mxu0
      %618 = vdwg.mxu0
      %v620 = vcombine.high %v614, %v614
      %v622 = vunpack.c.l.s4 1983009808
      %v623 = vunpack.c.0.s8 %v622
      %v624 = vlaneseq
      %v625 = vshrl.u32 %v624, 7
      %v626 = vsub.s32 %v623, %v625
      %v627 = vrot.slane %v614, %v626
      %v629 = vunpack.c.l.s4 1983009808
      %v630 = vunpack.c.0.s8 %v629
      %v631 = vlaneseq
      %v632 = vshrl.u32 %v631, 7
      %v633 = vsub.s32 %v630, %v632
      %v634 = vrot.slane %v620, %v633
      %v635 = vcombine.high %v627, %v627
      %v636 = vcombine.high %v634, %v634
      %641 = vst [vmem:[#allocation2] sm:$0x3] %v627
      %642 = vst [vmem:[#allocation2 + $0x2] sm:$0x3] %v635
      %643 = vst [vmem:[#allocation2 + $0x4] sm:$0x3] %v634
      %644 = vst [vmem:[#allocation2 + $0x6] sm:$0x3] %v636
      %v645 = vld [vmem:[%s4] sm:$0xff]
      %v646 = vld [vmem:[%s4 + $0x8] sm:$0xff]
      %v647 = vld [vmem:[%s4 + $0x10] sm:$0xff]
      %v648 = vld [vmem:[%s4 + $0x18] sm:$0xff]
      %v649 = vld [vmem:[%s4 + $0x20] sm:$0xff]
      %v650 = vld [vmem:[%s4 + $0x28] sm:$0xff]
      %v651 = vld [vmem:[%s4 + $0x30] sm:$0xff]
      %v652 = vld [vmem:[%s4 + $0x38] sm:$0xff]
      %v653 = vld [vmem:[%s6] sm:$0x1]
      %v654 = vlaneseq
      %v655 = vand.u32 %v654, 127
      %vm656 = vcmp.ge.s32.totalorder %v655, 64
      %vm657 = vcmp.lt.s32.totalorder %v655, 96
      %vm658 = vmand %vm656, %vm657
      %v659 = vsel %vm658, 2.0, 1.0
      %v660 = vld [vmem:[#allocation4] sm:$0x3]
      %s661 = scalar_lea.vmem [#allocation4], 2
      %v662 = vld [vmem:[%s661] sm:$0x3]
      %s663 = scalar_lea.vmem [#allocation4], 4
      %v664 = vld [vmem:[%s663] sm:$0x3]
      %s665 = scalar_lea.vmem [#allocation4], 6
      %v666 = vld [vmem:[%s665] sm:$0x3]
      %668 = vrot.lane.b32.xlu0 %v664, 32
      %v669 = vpop.permute.xlu0 %668
      %v671 = vsel %vm575, %v660, %v669
      %v672 = vpack.c.bf16 %v671, %v671
      %v681 = vunpack.c.l.b16 %v645
      %v682 = vunpack.c.h.b16 %v645
      %v683 = vunpack.c.l.b16 %v646
      %v684 = vunpack.c.h.b16 %v646
      %v685 = vunpack.c.l.b16 %v647
      %v686 = vunpack.c.h.b16 %v647
      %v687 = vunpack.c.l.b16 %v648
      %v688 = vunpack.c.h.b16 %v648
      %v689 = vunpack.c.l.b16 %v649
      %v690 = vunpack.c.h.b16 %v649
      %v691 = vunpack.c.l.b16 %v650
      %v692 = vunpack.c.h.b16 %v650
      %v693 = vunpack.c.l.b16 %v651
      %v694 = vunpack.c.h.b16 %v651
      %v695 = vunpack.c.l.b16 %v652
      %v696 = vunpack.c.h.b16 %v652
      %v697 = vpack.c.b16 %v683, %v681
      %v698 = vpack.c.b16 %v684, %v682
      %v699 = vpack.c.b16 %v687, %v685
      %v700 = vpack.c.b16 %v688, %v686
      %v701 = vpack.c.b16 %v691, %v689
      %v702 = vpack.c.b16 %v692, %v690
      %v703 = vpack.c.b16 %v695, %v693
      %v704 = vpack.c.b16 %v696, %v694
      %vm713 = vcmask 523264
      %v715 = vsel %vm713, %v672, 0
      %717 = vmatprep.subr.bf16.mxu0 %v698
      %718 = vmatpush1.bf16.msra.mxu0 %v697
      %719 = vmatprep.subr.bf16.mxu0 %v700
      %720 = vmatpush1.bf16.msra.mxu0 %v699
      %721 = vmatprep.subr.bf16.mxu0 %v702
      %722 = vmatpush1.bf16.msra.mxu0 %v701
      %723 = vmatprep.subr.bf16.mxu0 %v704
      %724 = vmatpush1.bf16.msra.mxu0 %v703
      %725 = vmatprep.subr.bf16.mxu0 0
      %726 = vmatpush1.bf16.msra.mxu0 0
      %727 = vmatprep.subr.bf16.mxu0 0
      %728 = vmatpush1.bf16.msra.mxu0 0
      %729 = vmatprep.subr.bf16.mxu0 0
      %730 = vmatpush1.bf16.msra.mxu0 0
      %731 = vmatprep.subr.bf16.mxu0 0
      %732 = vmatpush1.bf16.msra.mxu0 0
      %733 = vmatprep.subr.bf16.mxu0 0
      %734 = vmatpush1.bf16.msra.mxu0 0
      %735 = vmatprep.subr.bf16.mxu0 0
      %736 = vmatpush1.bf16.msra.mxu0 0
      %737 = vmatprep.subr.bf16.mxu0 0
      %738 = vmatpush1.bf16.msra.mxu0 0
      %739 = vmatprep.subr.bf16.mxu0 0
      %740 = vmatpush1.bf16.msra.mxu0 0
      %741 = vmatprep.subr.bf16.mxu0 0
      %742 = vmatpush1.bf16.msra.mxu0 0
      %743 = vmatprep.subr.bf16.mxu0 0
      %744 = vmatpush1.bf16.msra.mxu0 0
      %745 = vmatprep.subr.bf16.mxu0 0
      %746 = vmatpush1.bf16.msra.mxu0 0
      %747 = vmatprep.subr.bf16.mxu0 0
      %748 = vmatpush1.bf16.msra.mxu0 0
      %749 = vmatprep.mubr.bf16.mxu0 0
      %750 = vmatmul.mubr.bf16.gmra.mrb[0].mxu0 %v715
      %v751 = vpop.f32.mrb[0].mxu0
      %v752 = vadd.f32 0.0, %v751
      %v753 = vpop.f32.mrb[0].mxu0
      %v754 = vpop.f32.mrb[0].mxu0
      %v755 = vpop.f32.mrb[0].mxu0
      %756 = vdwg.mxu0
      %v757 = vld [vmem:[#allocation2] sm:$0x3]
      %v758 = vadd.f32 %v757, %v752
      %v759 = vmul.f32 %v758, %v659
      %v760 = vxor.u32 %v759, 2147483648
      %v761 = vmul.f32 %v760, 1.442695
      %v762 = vpow.pop %v761
      %v763 = vadd.f32 %v762, 1.0
      %v764 = vrcp.pop %v763
      %v765 = vmul.f32 1.0, %v764
      %v766 = vmul.f32 %v765, 2.0
      %v767 = vsub.f32 %v766, 1.0
      %769 = vrot.lane.b32.xlu0 %v662, 32
      %v770 = vpop.permute.xlu0 %769
      %v772 = vmul.f32 %v765, %v770
      %774 = vrot.lane.b32.xlu0 %v767, 64
      %v775 = vpop.permute.xlu0 %774
      %v777 = vmul.f32 %v765, %v775
      %779 = vrot.lane.b32.xlu0 %v777, 32
      %v780 = vpop.permute.xlu0 %779
      %v782 = vadd.f32 %v772, %v780
      %v783 = vtanh.pop %v782
      %785 = vrot.lane.b32.xlu0 %v783, 64
      %v786 = vpop.permute.xlu0 %785
      %v788 = vmul.f32 %v765, %v786
      %790 = vrot.lane.b32.xlu0 %v788, 32
      %v791 = vpop.permute.xlu0 %790
      %v793 = vsel %vm575, %v791, %v669
      %v794 = vpack.c.bf16 %v793, %v793
      %v796 = vsel %vm713, %v794, 0
      %798 = vmatprep.subr.bf16.mxu0 %v698
      %799 = vmatpush1.bf16.msra.mxu0 %v697
      %800 = vmatprep.subr.bf16.mxu0 %v700
      %801 = vmatpush1.bf16.msra.mxu0 %v699
      %802 = vmatprep.subr.bf16.mxu0 %v702
      %803 = vmatpush1.bf16.msra.mxu0 %v701
      %804 = vmatprep.subr.bf16.mxu0 %v704
      %805 = vmatpush1.bf16.msra.mxu0 %v703
      %806 = vmatprep.subr.bf16.mxu0 0
      %807 = vmatpush1.bf16.msra.mxu0 0
      %808 = vmatprep.subr.bf16.mxu0 0
      %809 = vmatpush1.bf16.msra.mxu0 0
      %810 = vmatprep.subr.bf16.mxu0 0
      %811 = vmatpush1.bf16.msra.mxu0 0
      %812 = vmatprep.subr.bf16.mxu0 0
      %813 = vmatpush1.bf16.msra.mxu0 0
      %814 = vmatprep.subr.bf16.mxu0 0
      %815 = vmatpush1.bf16.msra.mxu0 0
      %816 = vmatprep.subr.bf16.mxu0 0
      %817 = vmatpush1.bf16.msra.mxu0 0
      %818 = vmatprep.subr.bf16.mxu0 0
      %819 = vmatpush1.bf16.msra.mxu0 0
      %820 = vmatprep.subr.bf16.mxu0 0
      %821 = vmatpush1.bf16.msra.mxu0 0
      %822 = vmatprep.subr.bf16.mxu0 0
      %823 = vmatpush1.bf16.msra.mxu0 0
      %824 = vmatprep.subr.bf16.mxu0 0
      %825 = vmatpush1.bf16.msra.mxu0 0
      %826 = vmatprep.subr.bf16.mxu0 0
      %827 = vmatpush1.bf16.msra.mxu0 0
      %828 = vmatprep.subr.bf16.mxu0 0
      %829 = vmatpush1.bf16.msra.mxu0 0
      %830 = vmatprep.mubr.bf16.mxu0 0
      %831 = vmatmul.mubr.bf16.gmra.mrb[0].mxu0 %v796
      %v832 = vpop.f32.mrb[0].mxu0
      %v833 = vadd.f32 0.0, %v832
      %v834 = vpop.f32.mrb[0].mxu0
      %v835 = vadd.f32 0.0, %v834
      %v836 = vpop.f32.mrb[0].mxu0
      %v837 = vpop.f32.mrb[0].mxu0
      %838 = vdwg.mxu0
      %s839 = scalar_lea.vmem [#allocation2], 2
      %v840 = vld [vmem:[%s839] sm:$0x3]
      %v841 = vadd.f32 %v840, %v833
      %v843 = vlaneseq
      %v844 = vshrl.u32 %v843, 7
      %v845 = vsub.s32 0, %v844
      %v846 = vrot.slane %v653, %v845
      %v848 = vadd.f32 %v835, %v846
      %v850 = vrot.slane %v848, 6
      %vm852 = vcmask 1041408
      %v853 = vsel %vm852, %v841, %v850
      %v855 = vrot.slane %v666, 6
      %856 = vrot.lane.b32.xlu0 %v855, 32
      %v857 = vpop.permute.xlu0 %856
      %v859 = vsel %vm852, %v782, %v857
      %v860 = vmul.f32 %v853, %v659
      %v861 = vxor.u32 %v860, 2147483648
      %v862 = vmul.f32 %v861, 1.442695
      %v863 = vpow.pop %v862
      %v864 = vadd.f32 %v863, 1.0
      %v865 = vrcp.pop %v864
      %v866 = vmul.f32 1.0, %v865
      %v867 = vmul.f32 %v866, 2.0
      %v868 = vsub.f32 %v867, 1.0
      %v869 = vmul.f32 %v866, %v859
      %871 = vrot.lane.b32.xlu0 %v868, 64
      %v872 = vpop.permute.xlu0 %871
      %v874 = vmul.f32 %v866, %v872
      %876 = vrot.lane.b32.xlu0 %v874, 32
      %v877 = vpop.permute.xlu0 %876
      %v879 = vadd.f32 %v869, %v877
      %v880 = vtanh.pop %v879
      %882 = vrot.lane.b32.xlu0 %v880, 64
      %v883 = vpop.permute.xlu0 %882
      %v885 = vmul.f32 %v866, %v883
      %887 = vrot.lane.b32.xlu0 %v885, 32
      %v888 = vpop.permute.xlu0 %887
      %vm890 = vcmask 257026
      %891 = vst.msk [vmem:[#allocation3 - $0x2] sm:$0xc] %vm890, %v888
      %v892 = vrot.slane %v885, 2
      %893 = vrot.lane.b32.xlu0 %v892, 64
      %v894 = vpop.permute.xlu0 %893
      %v896 = vsel %vm575, %v888, %v894
      %v897 = vpack.c.bf16 %v896, %v896
      %v899 = vsel %vm713, %v897, 0
      %901 = vmatprep.subr.bf16.mxu0 %v698
      %902 = vmatpush1.bf16.msra.mxu0 %v697
      %903 = vmatprep.subr.bf16.mxu0 %v700
      %904 = vmatpush1.bf16.msra.mxu0 %v699
      %905 = vmatprep.subr.bf16.mxu0 %v702
      %906 = vmatpush1.bf16.msra.mxu0 %v701
      %907 = vmatprep.subr.bf16.mxu0 %v704
      %908 = vmatpush1.bf16.msra.mxu0 %v703
      %909 = vmatprep.subr.bf16.mxu0 0
      %910 = vmatpush1.bf16.msra.mxu0 0
      %911 = vmatprep.subr.bf16.mxu0 0
      %912 = vmatpush1.bf16.msra.mxu0 0
      %913 = vmatprep.subr.bf16.mxu0 0
      %914 = vmatpush1.bf16.msra.mxu0 0
      %915 = vmatprep.subr.bf16.mxu0 0
      %916 = vmatpush1.bf16.msra.mxu0 0
      %917 = vmatprep.subr.bf16.mxu0 0
      %918 = vmatpush1.bf16.msra.mxu0 0
      %919 = vmatprep.subr.bf16.mxu0 0
      %920 = vmatpush1.bf16.msra.mxu0 0
      %921 = vmatprep.subr.bf16.mxu0 0
      %922 = vmatpush1.bf16.msra.mxu0 0
      %923 = vmatprep.subr.bf16.mxu0 0
      %924 = vmatpush1.bf16.msra.mxu0 0
      %925 = vmatprep.subr.bf16.mxu0 0
      %926 = vmatpush1.bf16.msra.mxu0 0
      %927 = vmatprep.subr.bf16.mxu0 0
      %928 = vmatpush1.bf16.msra.mxu0 0
      %929 = vmatprep.subr.bf16.mxu0 0
      %930 = vmatpush1.bf16.msra.mxu0 0
      %931 = vmatprep.subr.bf16.mxu0 0
      %932 = vmatpush1.bf16.msra.mxu0 0
      %933 = vmatprep.mubr.bf16.mxu0 0
      %934 = vmatmul.mubr.bf16.gmra.mrb[0].mxu0 %v899
      %v935 = vpop.f32.mrb[0].mxu0
      %v936 = vadd.f32 0.0, %v935
      %v937 = vpop.f32.mrb[0].mxu0
      %v938 = vadd.f32 0.0, %v937
      %v939 = vpop.f32.mrb[0].mxu0
      %v940 = vpop.f32.mrb[0].mxu0
      %941 = vdwg.mxu0
      %s942 = scalar_lea.vmem [#allocation2], 4
      %v943 = vld [vmem:[%s942] sm:$0x3]
      %v944 = vadd.f32 %v943, %v936
      %v945 = vadd.f32 %v938, %v846
      %v947 = vrot.slane %v945, 6
      %v949 = vsel %vm852, %v944, %v947
      %v950 = vmul.f32 %v949, %v659
      %v951 = vxor.u32 %v950, 2147483648
      %v952 = vmul.f32 %v951, 1.442695
      %v953 = vpow.pop %v952
      %v954 = vadd.f32 %v953, 1.0
      %v955 = vrcp.pop %v954
      %v956 = vmul.f32 1.0, %v955
      %v957 = vmul.f32 %v956, 2.0
      %v958 = vsub.f32 %v957, 1.0
      %v959 = vmul.f32 %v956, %v879
      %961 = vrot.lane.b32.xlu0 %v958, 64
      %v962 = vpop.permute.xlu0 %961
      %v964 = vmul.f32 %v956, %v962
      %966 = vrot.lane.b32.xlu0 %v964, 32
      %v967 = vpop.permute.xlu0 %966
      %v969 = vadd.f32 %v959, %v967
      %v970 = vtanh.pop %v969
      %972 = vrot.lane.b32.xlu0 %v970, 64
      %v973 = vpop.permute.xlu0 %972
      %v975 = vmul.f32 %v956, %v973
      %977 = vrot.lane.b32.xlu0 %v975, 32
      %v978 = vpop.permute.xlu0 %977
      %s980 = scalar_lea.vmem [#allocation3], 2
      %981 = vst.msk [vmem:[%s980 - $0x2] sm:$0xc] %vm890, %v978
      %v982 = vrot.slane %v975, 2
      %983 = vrot.lane.b32.xlu0 %v982, 64
      %v984 = vpop.permute.xlu0 %983
      %v986 = vsel %vm575, %v978, %v984
      %v987 = vpack.c.bf16 %v986, %v986
      %v989 = vsel %vm713, %v987, 0
      %991 = vmatprep.subr.bf16.mxu0 %v698
      %992 = vmatpush1.bf16.msra.mxu0 %v697
      %993 = vmatprep.subr.bf16.mxu0 %v700
      %994 = vmatpush1.bf16.msra.mxu0 %v699
      %995 = vmatprep.subr.bf16.mxu0 %v702
      %996 = vmatpush1.bf16.msra.mxu0 %v701
      %997 = vmatprep.subr.bf16.mxu0 %v704
      %998 = vmatpush1.bf16.msra.mxu0 %v703
      %999 = vmatprep.subr.bf16.mxu0 0
      %1000 = vmatpush1.bf16.msra.mxu0 0
      %1001 = vmatprep.subr.bf16.mxu0 0
      %1002 = vmatpush1.bf16.msra.mxu0 0
      %1003 = vmatprep.subr.bf16.mxu0 0
      %1004 = vmatpush1.bf16.msra.mxu0 0
      %1005 = vmatprep.subr.bf16.mxu0 0
      %1006 = vmatpush1.bf16.msra.mxu0 0
      %1007 = vmatprep.subr.bf16.mxu0 0
      %1008 = vmatpush1.bf16.msra.mxu0 0
      %1009 = vmatprep.subr.bf16.mxu0 0
      %1010 = vmatpush1.bf16.msra.mxu0 0
      %1011 = vmatprep.subr.bf16.mxu0 0
      %1012 = vmatpush1.bf16.msra.mxu0 0
      %1013 = vmatprep.subr.bf16.mxu0 0
      %1014 = vmatpush1.bf16.msra.mxu0 0
      %1015 = vmatprep.subr.bf16.mxu0 0
      %1016 = vmatpush1.bf16.msra.mxu0 0
      %1017 = vmatprep.subr.bf16.mxu0 0
      %1018 = vmatpush1.bf16.msra.mxu0 0
      %1019 = vmatprep.subr.bf16.mxu0 0
      %1020 = vmatpush1.bf16.msra.mxu0 0
      %1021 = vmatprep.subr.bf16.mxu0 0
      %1022 = vmatpush1.bf16.msra.mxu0 0
      %1023 = vmatprep.mubr.bf16.mxu0 0
      %1024 = vmatmul.mubr.bf16.gmra.mrb[0].mxu0 %v989
      %v1025 = vpop.f32.mrb[0].mxu0
      %v1026 = vadd.f32 0.0, %v1025
      %v1027 = vpop.f32.mrb[0].mxu0
      %v1028 = vadd.f32 0.0, %v1027
      %v1029 = vpop.f32.mrb[0].mxu0
      %v1030 = vpop.f32.mrb[0].mxu0
      %1031 = vdwg.mxu0
      %s1032 = scalar_lea.vmem [#allocation2], 6
      %v1033 = vld [vmem:[%s1032] sm:$0x3]
      %v1034 = vadd.f32 %v1033, %v1026
      %v1035 = vadd.f32 %v1028, %v846
      %v1037 = vrot.slane %v1035, 6
      %v1039 = vsel %vm852, %v1034, %v1037
      %v1040 = vmul.f32 %v1039, %v659
      %v1041 = vxor.u32 %v1040, 2147483648
      %v1042 = vmul.f32 %v1041, 1.442695
      %v1043 = vpow.pop %v1042
      %v1044 = vadd.f32 %v1043, 1.0
      %v1045 = vrcp.pop %v1044
      %v1046 = vmul.f32 1.0, %v1045
      %v1047 = vmul.f32 %v1046, 2.0
      %v1048 = vsub.f32 %v1047, 1.0
      %v1049 = vmul.f32 %v1046, %v969
      %1051 = vrot.lane.b32.xlu0 %v1048, 64
      %v1052 = vpop.permute.xlu0 %1051
      %v1054 = vmul.f32 %v1046, %v1052
      %1056 = vrot.lane.b32.xlu0 %v1054, 32
      %v1057 = vpop.permute.xlu0 %1056
      %v1059 = vadd.f32 %v1049, %v1057
      %v1060 = vtanh.pop %v1059
      %1062 = vrot.lane.b32.xlu0 %v1060, 64
      %v1063 = vpop.permute.xlu0 %1062
      %v1065 = vmul.f32 %v1046, %v1063
      %1067 = vrot.lane.b32.xlu0 %v1065, 32
      %v1068 = vpop.permute.xlu0 %1067
      %s1070 = scalar_lea.vmem [#allocation3], 4
      %1071 = vst.msk [vmem:[%s1070 - $0x2] sm:$0xc] %vm890, %v1068
      %v1072 = vrot.slane %v1065, 2
      %1073 = vrot.lane.b32.xlu0 %v1072, 64
      %v1074 = vpop.permute.xlu0 %1073
      %v1076 = vsel %vm575, %v1068, %v1074
      %v1077 = vpack.c.bf16 %v1076, %v1076
      %v1079 = vsel %vm713, %v1077, 0
      %1081 = vmatprep.subr.bf16.mxu0 %v698
      %1082 = vmatpush1.bf16.msra.mxu0 %v697
      %1083 = vmatprep.subr.bf16.mxu0 %v700
      %1084 = vmatpush1.bf16.msra.mxu0 %v699
      %1085 = vmatprep.subr.bf16.mxu0 %v702
      %1086 = vmatpush1.bf16.msra.mxu0 %v701
      %1087 = vmatprep.subr.bf16.mxu0 %v704
      %1088 = vmatpush1.bf16.msra.mxu0 %v703
      %1089 = vmatprep.subr.bf16.mxu0 0
      %1090 = vmatpush1.bf16.msra.mxu0 0
      %1091 = vmatprep.subr.bf16.mxu0 0
      %1092 = vmatpush1.bf16.msra.mxu0 0
      %1093 = vmatprep.subr.bf16.mxu0 0
      %1094 = vmatpush1.bf16.msra.mxu0 0
      %1095 = vmatprep.subr.bf16.mxu0 0
      %1096 = vmatpush1.bf16.msra.mxu0 0
      %1097 = vmatprep.subr.bf16.mxu0 0
      %1098 = vmatpush1.bf16.msra.mxu0 0
      %1099 = vmatprep.subr.bf16.mxu0 0
      %1100 = vmatpush1.bf16.msra.mxu0 0
      %1101 = vmatprep.subr.bf16.mxu0 0
      %1102 = vmatpush1.bf16.msra.mxu0 0
      %1103 = vmatprep.subr.bf16.mxu0 0
      %1104 = vmatpush1.bf16.msra.mxu0 0
      %1105 = vmatprep.subr.bf16.mxu0 0
      %1106 = vmatpush1.bf16.msra.mxu0 0
      %1107 = vmatprep.subr.bf16.mxu0 0
      %1108 = vmatpush1.bf16.msra.mxu0 0
      %1109 = vmatprep.subr.bf16.mxu0 0
      %1110 = vmatpush1.bf16.msra.mxu0 0
      %1111 = vmatprep.subr.bf16.mxu0 0
      %1112 = vmatpush1.bf16.msra.mxu0 0
      %1113 = vmatprep.mubr.bf16.mxu0 0
      %1114 = vmatmul.mubr.bf16.gmra.mrb[0].mxu0 %v1079
      %v1115 = vpop.f32.mrb[0].mxu0
      %v1116 = vpop.f32.mrb[0].mxu0
      %v1117 = vadd.f32 0.0, %v1116
      %v1118 = vpop.f32.mrb[0].mxu0
      %v1119 = vpop.f32.mrb[0].mxu0
      %1120 = vdwg.mxu0
      %v1121 = vadd.f32 %v1117, %v846
      %v1122 = vmul.f32 %v1121, %v659
      %v1123 = vxor.u32 %v1122, 2147483648
      %v1124 = vmul.f32 %v1123, 1.442695
      %v1125 = vpow.pop %v1124
      %v1126 = vadd.f32 %v1125, 1.0
      %v1127 = vrcp.pop %v1126
      %v1128 = vmul.f32 1.0, %v1127
      %v1129 = vmul.f32 %v1128, 2.0
      %v1130 = vsub.f32 %v1129, 1.0
      %v1132 = vrot.slane %v1059, 2
      %v1134 = vmul.f32 %v1128, %v1132
      %1136 = vrot.lane.b32.xlu0 %v1130, 64
      %v1137 = vpop.permute.xlu0 %1136
      %v1139 = vmul.f32 %v1128, %v1137
      %1141 = vrot.lane.b32.xlu0 %v1139, 32
      %v1142 = vpop.permute.xlu0 %1141
      %v1144 = vadd.f32 %v1134, %v1142
      %v1145 = vtanh.pop %v1144
      %1147 = vrot.lane.b32.xlu0 %v1145, 64
      %v1148 = vpop.permute.xlu0 %1147
      %v1150 = vmul.f32 %v1128, %v1148
      %1152 = vrot.lane.b32.xlu0 %v1150, 32
      %v1153 = vpop.permute.xlu0 %1152
      %s1155 = scalar_lea.vmem [#allocation3], 6
      %1156 = vst.msk [vmem:[%s1155] sm:$0x3] %vm455, %v1153
      %v1157 = vld [vmem:[#allocation3] sm:$0x3]
      %v1158 = vld [vmem:[#allocation3 + $0x2] sm:$0x3]
      %v1159 = vld [vmem:[#allocation3 + $0x4] sm:$0x3]
      %v1160 = vld [vmem:[#allocation3 + $0x6] sm:$0x3]
      %v1161 = vld [vmem:[%s7] sm:$0xf]
      %v1162 = vld [vmem:[%s7 + $0x4] sm:$0xf]
      %v1163 = vld [vmem:[%s7 + $0x8] sm:$0xf]
      %v1164 = vld [vmem:[%s7 + $0xc] sm:$0xf]
      %v1169 = vcombine.low %v1157, %v1158
      %v1170 = vcombine.low %v1159, %v1160
      %v1172 = vunpack.c.l.s4 1983009808
      %v1173 = vunpack.c.0.s8 %v1172
      %v1174 = vlaneseq
      %v1175 = vshrl.u32 %v1174, 7
      %v1176 = vsub.s32 %v1173, %v1175
      %v1177 = vrot.slane %v1169, %v1176
      %v1179 = vunpack.c.l.s4 1983009808
      %v1180 = vunpack.c.0.s8 %v1179
      %v1181 = vlaneseq
      %v1182 = vshrl.u32 %v1181, 7
      %v1183 = vsub.s32 %v1180, %v1182
      %v1184 = vrot.slane %v1170, %v1183
      %v1185 = vcombine.low %v1177, %v1184
      %v1187 = vpack.c.bf16 %v1185, %v1185
      %v1188 = vld [vmem:[%s8] sm:$0x1]
      %v1190 = vlaneseq
      %v1191 = vshrl.u32 %v1190, 7
      %v1192 = vsub.s32 0, %v1191
      %v1193 = vrot.slane %v1188, %v1192
      %v1199 = vunpack.c.l.b16 %v1161
      %v1200 = vunpack.c.l.b16 %v1162
      %v1201 = vunpack.c.l.b16 %v1163
      %v1202 = vunpack.c.l.b16 %v1164
      %v1203 = vpack.c.b16 %v1200, %v1199
      %v1204 = vpack.c.b16 %v1202, %v1201
      %v1208 = vsel %vm575, %v1187, 0
      %1210 = vmatprep.subr.bf16.mxu0 0
      %1211 = vmatpush1.bf16.msra.mxu0 %v1203
      %1212 = vmatprep.subr.bf16.mxu0 0
      %1213 = vmatpush1.bf16.msra.mxu0 %v1204
      %1214 = vmatprep.subr.bf16.mxu0 0
      %1215 = vmatpush1.bf16.msra.mxu0 0
      %1216 = vmatprep.subr.bf16.mxu0 0
      %1217 = vmatpush1.bf16.msra.mxu0 0
      %1218 = vmatprep.subr.bf16.mxu0 0
      %1219 = vmatpush1.bf16.msra.mxu0 0
      %1220 = vmatprep.subr.bf16.mxu0 0
      %1221 = vmatpush1.bf16.msra.mxu0 0
      %1222 = vmatprep.subr.bf16.mxu0 0
      %1223 = vmatpush1.bf16.msra.mxu0 0
      %1224 = vmatprep.subr.bf16.mxu0 0
      %1225 = vmatpush1.bf16.msra.mxu0 0
      %1226 = vmatprep.subr.bf16.mxu0 0
      %1227 = vmatpush1.bf16.msra.mxu0 0
      %1228 = vmatprep.subr.bf16.mxu0 0
      %1229 = vmatpush1.bf16.msra.mxu0 0
      %1230 = vmatprep.subr.bf16.mxu0 0
      %1231 = vmatpush1.bf16.msra.mxu0 0
      %1232 = vmatprep.subr.bf16.mxu0 0
      %1233 = vmatpush1.bf16.msra.mxu0 0
      %1234 = vmatprep.subr.bf16.mxu0 0
      %1235 = vmatpush1.bf16.msra.mxu0 0
      %1236 = vmatprep.subr.bf16.mxu0 0
      %1237 = vmatpush1.bf16.msra.mxu0 0
      %1238 = vmatprep.subr.bf16.mxu0 0
      %1239 = vmatpush1.bf16.msra.mxu0 0
      %1240 = vmatprep.subr.bf16.mxu0 0
      %1241 = vmatpush1.bf16.msra.mxu0 0
      %1242 = vmatprep.mubr.bf16.mxu0 0
      %1243 = vmatmul.mubr.bf16.gmra.mrb[0].mxu0 %v1208
      %v1244 = vpop.f32.mrb[0].mxu0
      %v1245 = vadd.f32 %v1193, %v1244
      %v1246 = vpop.f32.mrb[0].mxu0
      %v1247 = vpop.f32.mrb[0].mxu0
      %v1248 = vpop.f32.mrb[0].mxu0
      %1249 = vdwg.mxu0
      %v1250 = vld [vmem:[%s9] sm:$0x1]
      %v1251 = vld [vmem:[%s10] sm:$0x1]
      %v1252 = vsel %vm575, %v1245, 0.0
      %1253 = vadd.xlane.f32.xlu0 %v1252
      %v1254 = vpop.xlane.xlu0 %1253
      %v1255 = vmul.f32 %v1254, %v468
      %v1256 = vsub.f32 %v1245, %v1255
      %v1257 = vmul.f32 %v1256, %v1256
      %v1258 = vsel %vm575, %v1257, 0.0
      %1259 = vadd.xlane.f32.xlu0 %v1258
      %v1260 = vpop.xlane.xlu0 %1259
      %v1261 = vmul.f32 %v1260, %v468
      %v1262 = vadd.f32 %v1261, 1e-05
      %v1263 = vrsqrt.pop %v1262
      %v1264 = vmul.f32 %v1256, %v1263
      %v1266 = vlaneseq
      %v1267 = vshrl.u32 %v1266, 7
      %v1268 = vsub.s32 0, %v1267
      %v1269 = vrot.slane %v1250, %v1268
      %v1271 = vmul.f32 %v1264, %v1269
      %v1273 = vlaneseq
      %v1274 = vshrl.u32 %v1273, 7
      %v1275 = vsub.s32 0, %v1274
      %v1276 = vrot.slane %v1251, %v1275
      %v1278 = vadd.f32 %v1271, %v1276
      %v1280 = vcombine.high %v1278, %v1278
      %v1282 = vunpack.c.l.s4 1983009808
      %v1283 = vunpack.c.0.s8 %v1282
      %v1284 = vlaneseq
      %v1285 = vshrl.u32 %v1284, 7
      %v1286 = vsub.s32 %v1283, %v1285
      %v1287 = vrot.slane %v1278, %v1286
      %v1289 = vunpack.c.l.s4 1983009808
      %v1290 = vunpack.c.0.s8 %v1289
      %v1291 = vlaneseq
      %v1292 = vshrl.u32 %v1291, 7
      %v1293 = vsub.s32 %v1290, %v1292
      %v1294 = vrot.slane %v1280, %v1293
      %v1295 = vcombine.high %v1287, %v1287
      %v1296 = vcombine.high %v1294, %v1294
      %1301 = vst.msk [vmem:[%s437] sm:$0x3] %vm455, %v1287
      %1302 = vst.msk [vmem:[%s437 + $0x2] sm:$0x3] %vm455, %v1295
      %1303 = vst.msk [vmem:[%s437 + $0x4] sm:$0x3] %vm455, %v1294
      %1304 = vst.msk [vmem:[%s437 + $0x6] sm:$0x3] %vm455, %v1296
      %1305 = vst.msk [vmem:[#allocation4] sm:$0x3] %vm455, %v1068
      %1306 = vrot.lane.b32.xlu0 %v1059, 96
      %v1307 = vpop.permute.xlu0 %1306
      %1309 = vst.msk [vmem:[%s661] sm:$0x3] %vm455, %v1307
      %1310 = vst.msk [vmem:[%s663] sm:$0x3] %vm455, %v1153
      %1312 = vrot.lane.b32.xlu0 %v1144, 96
      %v1313 = vpop.permute.xlu0 %1312
      %1315 = vst.msk [vmem:[%s665] sm:$0x3] %vm455, %v1313
      %1316 = vst.msk [vmem:[%s12] sm:$0x3] %vm455, %v1068
      %1317 = vst.msk [vmem:[%s13] sm:$0x3] %vm455, %v1307
      %s1318 = scalar_lea.vmem %s12, 2
      %1319 = vst.msk [vmem:[%s1318] sm:$0x3] %vm455, %v1153
      %s1320 = scalar_lea.vmem %s13, 2
      %1321 = vst.msk [vmem:[%s1320] sm:$0x3] %vm455, %v1313
      %s1322 = smul.u32 4, %s25
      %p1323 = scmp.lt.s32.totalorder %s1322, 7
      %s1324 = scalar_select %p1323, %s1322, 7
      %s1325 = smul.addr %s1324, 2
      %s1326 = scalar_lea.vmem %s11, %s1325
      // Predicated region
      $region69: #{predictor_forward.1} parent=63 // pred_check
        %p1327 = pneg %p279
      $region70: #{predictor_forward.1} parent=63 // pred_check_branch
        %1329 = sbr.rel (%p1327) target = $region72
      $region71: #{predictor_forward.1} parent=63 // pred_region
        %s1330 = smul.u32 4, %s25
      $region72: #{predictor_forward.1} parent=63 // pred_fallthru
        _
      // Predicated region
      $region73: #{predictor_forward.1} parent=63 // pred_check
        %p1331 = pneg %p300
      $region74: #{predictor_forward.1} parent=63 // pred_check_branch
        %1333 = sbr.rel (%p1331) target = $region76
      $region75: #{predictor_forward.1} parent=63 // pred_region
        _
      $region76: #{predictor_forward.1} parent=63 // pred_fallthru
        _
      // Predicated region
      $region77: #{predictor_forward.1} parent=63 // pred_check
        %p1334 = pneg %p321
      $region78: #{predictor_forward.1} parent=63 // pred_check_branch
        %1336 = sbr.rel (%p1334) target = $region80
      $region79: #{predictor_forward.1} parent=63 // pred_region
        _
      $region80: #{predictor_forward.1} parent=63 // pred_fallthru
        _
      // Predicated region
      $region81: #{predictor_forward.1} parent=63 // pred_check
        %p1337 = pneg %p300
      $region82: #{predictor_forward.1} parent=63 // pred_check_branch
        %1339 = sbr.rel (%p1337) target = $region84
      $region83: #{predictor_forward.1} parent=63 // pred_region
        _
      $region84: #{predictor_forward.1} parent=63 // pred_fallthru
        _
      // Predicated region
      $region85: #{predictor_forward.1} parent=63 // pred_check
        %p1340 = pneg %p321
      $region86: #{predictor_forward.1} parent=63 // pred_check_branch
        %1342 = sbr.rel (%p1340) target = $region88
      $region87: #{predictor_forward.1} parent=63 // pred_region
        _
      $region88: #{predictor_forward.1} parent=63 // pred_fallthru
        _
    $region64: #{predictor_forward.1} parent=5 // pred_fallthru
      _
    %p1343 = scmp.le.s32.totalorder 2, %s20
    // Predicated region
    $region89: #{predictor_forward.1} parent=5 // pred_check
      %p1344 = pneg %p1343
    $region90: #{predictor_forward.1} parent=5 // pred_check_branch
      %1346 = sbr.rel (%p1344) target = $region92
    $region91: #{predictor_forward.1} parent=5 // pred_region
      %s1347 = ssub.s32 %s20, 2
      // Predicated region
      $region93: #{predictor_forward.1} parent=91 // pred_check
        %p1348 = pneg %p285
      $region94: #{predictor_forward.1} parent=91 // pred_check_branch
        %1350 = sbr.rel (%p1348) target = $region96
      $region95: #{predictor_forward.1} parent=91 // pred_region
        %s1351 = smul.u32 4, %s26
        %p1352 = scmp.lt.s32.totalorder %s1351, 7
        %s1353 = scalar_select %p1352, %s1351, 7
        %s1354 = smul.addr %s1353, 2
        %s1355 = scalar_lea.vmem %s11, %s1354
      $region96: #{predictor_forward.1} parent=91 // pred_fallthru
        _
    $region92: #{predictor_forward.1} parent=5 // pred_fallthru
      _
  $region6: #{predictor_forward.1} parent=0 // loop_footer
    %s24 = sadd.s32 1, %s20
  $region7: #{predictor_forward.1} parent=0 // loop_footer_branch
    %19 = sbr.rel target = $region3
  $region8: #{predictor_forward.1} parent=0 // loop_exit
    _

</llo_original>
